<compile_context>
chip_gen: v5e
topology: v5e:2x2
jax: 0.10.0
libtpu: 0.0.40
codegen_flags: <defaults>
</compile_context>

<pallas_src>
import functools

import jax
import jax.numpy as jnp
from jax.experimental import pallas as pl
from jax.experimental.pallas import tpu as pltpu


# ----------------------------------------------------------------------------
# Fused kernel: embedding gather + L-layer tanh RNN + batched output projection.
# ----------------------------------------------------------------------------
def _rnn_lm_kernel(num_layers, seq_len, batch, emb_dim, hidden_dim, vocab_pad,
                   tok_ref, emb_ref, h0_ref, *refs):
    # refs: [w_stacked_l, b_l]*L, fc_w, fc_b, logits_out, h_final_out,
    #       x_stage, y_stage, xh_scratch_0..L-1
    n_w = 2 * num_layers
    w_refs = refs[:n_w]
    fc_w_ref = refs[n_w]                    # (H, Vp)
    fc_b_ref = refs[n_w + 1]                # (1, Vp)
    logits_ref = refs[n_w + 2]              # (B, T, Vp)  batch-first, lane-dense
    hN_ref = refs[n_w + 3]                  # (L, B, H)
    x_stage = refs[n_w + 4]                 # (T, B, E)   staged embeddings
    y_stage = refs[n_w + 5]                 # (B, T, H)   staged RNN outputs
    xh = refs[n_w + 6:]                     # per-layer (B, in_dim + H)

    # --- Stage 1: embedding gather for all B*T tokens, hoisted out of the
    # recurrence. Dynamic row read from VMEM ref: O(1) per token.
    for t in range(seq_len):
        for b in range(batch):
            tok = tok_ref[b, t]                                     # SMEM scalar
            x_stage[t, pl.ds(b, 1), :] = emb_ref[pl.ds(tok, 1), :]  # (1, E)

    # --- Stage 2: load weights once; seed the hidden half of each xh buffer.
    w = [w_refs[2 * l][...] for l in range(num_layers)]             # (in_dim+H, H)
    bias = [w_refs[2 * l + 1][...] for l in range(num_layers)]      # (1, H)
    h_vals = []
    for l in range(num_layers):
        in_dim = emb_dim if l == 0 else hidden_dim
        h_l = h0_ref[l]                                             # (B, H)
        xh[l][:, in_dim:] = h_l
        h_vals.append(h_l)

    # --- Stage 3: recurrence. T is small & static -> fully unrolled; critical
    # path per step/layer is one fused matmul + tanh + sub-slice stores.
    # TODO(synk): for large T/H switch to lax.fori_loop(..., unroll=True) with
    # hidden state carried in VMEM to bound live ranges / instruction stream.
    for t in range(seq_len):
        xh[0][:, :emb_dim] = x_stage[t]                             # (B, E)
        for l in range(num_layers):
            in_dim = emb_dim if l == 0 else hidden_dim
            # tanh([x, h] @ [W_ih; W_hh] + (b_ih + b_hh)) -- one matmul/layer.
            h_new = jnp.tanh(
                jnp.dot(xh[l][...], w[l], preferred_element_type=jnp.float32)
                + bias[l])
            h_vals[l] = h_new
            xh[l][:, in_dim:] = h_new                 # hidden for step t+1
            if l + 1 < num_layers:
                # inter-layer dropout is identity in eval mode
                xh[l + 1][:, :hidden_dim] = h_new     # input to next layer
            else:
                y_stage[:, t, :] = h_new              # RNN output, batch-first

    # --- Stage 4: dropout(rnn_out) == identity (eval); one batched FC over
    # all B*T rows, single lane-dense (Vp=128-wide) store of the logits.
    y = y_stage[...].reshape(batch * seq_len, hidden_dim)
    logits = (jnp.dot(y, fc_w_ref[...], preferred_element_type=jnp.float32)
              + fc_b_ref[...])                                       # (B*T, Vp)
    logits_ref[...] = logits.reshape(batch, seq_len, vocab_pad).astype(
        logits_ref.dtype)

    for l in range(num_layers):
        hN_ref[l] = h_vals[l].astype(hN_ref.dtype)


def rnn_lm_forward(params, tokens, hidden):
    """tokens: (B, T) int32, hidden: (L, B, H). Returns (logits (B,T,V), hidden)."""
    B, T = tokens.shape
    L, _, H = hidden.shape
    V, E = params["embedding"].shape
    Vp = ((V + 127) // 128) * 128            # lane-pad FC output to 128 multiple

    fc_w_p = jnp.pad(params["fc_w"], ((0, 0), (0, Vp - V)))
    fc_b_p = jnp.pad(params["fc_b"], ((0, 0), (0, Vp - V)))

    vmem = pl.BlockSpec(memory_space=pltpu.MemorySpace.VMEM)
    smem = pl.BlockSpec(memory_space=pltpu.MemorySpace.SMEM)

    in_specs = [smem, vmem, vmem]                 # tokens, embedding, h0
    flat_in = [tokens.astype(jnp.int32), params["embedding"], hidden]
    for (w_stacked, b) in params["rnn_layers"]:
        in_specs += [vmem, vmem]
        flat_in += [w_stacked, b]
    in_specs += [vmem, vmem]
    flat_in += [fc_w_p, fc_b_p]

    scratch_shapes = [
        pltpu.VMEM((T, B, E), jnp.float32),       # staged embeddings
        pltpu.VMEM((B, T, H), jnp.float32),       # staged RNN outputs
    ]
    for l in range(L):
        in_dim = E if l == 0 else H
        scratch_shapes.append(pltpu.VMEM((B, in_dim + H), jnp.float32))

    logits_pad, h_final = pl.pallas_call(
        functools.partial(_rnn_lm_kernel, L, T, B, E, H, Vp),
        out_shape=[
            jax.ShapeDtypeStruct((B, T, Vp), jnp.float32),
            jax.ShapeDtypeStruct((L, B, H), jnp.float32),
        ],
        in_specs=in_specs,
        out_specs=[vmem, vmem],
        scratch_shapes=scratch_shapes,
    )(*flat_in)

    # Drop the padded lanes (cheap contiguous slice, tiny at V=64).
    return logits_pad[:, :, :V], h_final


# ----------------------------------------------------------------------------
# Pure-JAX reference for correctness check (PyTorch-equivalent math).
# ----------------------------------------------------------------------------
def rnn_lm_reference(params, tokens, hidden):
    emb = jnp.take(params["embedding"], tokens, axis=0)          # (B, T, E)
    L = hidden.shape[0]
    T = tokens.shape[1]
    h = [hidden[l] for l in range(L)]
    outs = []
    for t in range(T):
        inp = emb[:, t, :]
        for l, (w_stacked, b) in enumerate(params["rnn_layers"]):
            in_dim = inp.shape[1]
            w_ih, w_hh = w_stacked[:in_dim], w_stacked[in_dim:]
            h[l] = jnp.tanh(inp @ w_ih + h[l] @ w_hh + b)
            inp = h[l]
        outs.append(inp)
    y = jnp.stack(outs, axis=1)                                  # (B, T, H)
    logits = y @ params["fc_w"] + params["fc_b"]
    return logits, jnp.stack(h, axis=0)


def init_params(key, vocab_size, embedding_dim, hidden_dim, num_layers):
    keys = jax.random.split(key, 2 + 4 * num_layers)
    k = 1.0 / jnp.sqrt(hidden_dim)
    params = {
        "embedding": jax.random.normal(
            keys[0], (vocab_size, embedding_dim), jnp.float32)
    }
    layers = []
    for l in range(num_layers):
        in_dim = embedding_dim if l == 0 else hidden_dim
        kw = keys[2 + 4 * l: 2 + 4 * (l + 1)]
        w_ih = jax.random.uniform(kw[0], (in_dim, hidden_dim), jnp.float32, -k, k)
        w_hh = jax.random.uniform(kw[1], (hidden_dim, hidden_dim), jnp.float32, -k, k)
        b_ih = jax.random.uniform(kw[2], (1, hidden_dim), jnp.float32, -k, k)
        b_hh = jax.random.uniform(kw[3], (1, hidden_dim), jnp.float32, -k, k)
        # Pre-stack [W_ih; W_hh] so the kernel runs one fused matmul per layer;
        # combine the two biases.
        layers.append((jnp.concatenate([w_ih, w_hh], axis=0), b_ih + b_hh))
    params["rnn_layers"] = layers
    params["fc_w"] = jax.random.uniform(
        keys[1], (hidden_dim, vocab_size), jnp.float32, -k, k)
    params["fc_b"] = jnp.zeros((1, vocab_size), jnp.float32)
    return params


if __name__ == "__main__":
    # HyperParams: vocab_size=64, batch_size=2, seq_length=8, hidden_dim=32,
    #              num_layers=2, embedding_dim=32, dropout=0.0 (eval-mode)
    VOCAB, B, T, H, L, E = 64, 2, 8, 32, 2, 32

    key = jax.random.PRNGKey(0)
    k_param, k_tok = jax.random.split(key)
    params = init_params(k_param, VOCAB, E, H, L)

    tokens = jax.random.randint(k_tok, (B, T), 0, VOCAB, dtype=jnp.int32)
    hidden0 = jnp.zeros((L, B, H), jnp.float32)

    fwd = jax.jit(rnn_lm_forward)
    logits, hidden_out = fwd(params, tokens, hidden0)
    jax.block_until_ready((logits, hidden_out))

    ref_logits, ref_hidden = rnn_lm_reference(params, tokens, hidden0)
    assert logits.shape == (B, T, VOCAB)
    assert hidden_out.shape == (L, B, H)
    assert jnp.allclose(logits, ref_logits, rtol=1e-5, atol=1e-5)
    assert jnp.allclose(hidden_out, ref_hidden, rtol=1e-5, atol=1e-5)

    print("KERNEL_OK")
</pallas_src>

<mosaic_0001>
module attributes {stable_mosaic.version = 11 : i64} {
  func.func @_rnn_lm_kernel(%arg0: memref<2x8xi32, #tpu.memory_space<smem>>, %arg1: memref<64x32xf32, #tpu.memory_space<vmem>>, %arg2: memref<2x2x32xf32, #tpu.memory_space<vmem>>, %arg3: memref<64x32xf32, #tpu.memory_space<vmem>>, %arg4: memref<1x32xf32, #tpu.memory_space<vmem>>, %arg5: memref<64x32xf32, #tpu.memory_space<vmem>>, %arg6: memref<1x32xf32, #tpu.memory_space<vmem>>, %arg7: memref<32x128xf32, #tpu.memory_space<vmem>>, %arg8: memref<1x128xf32, #tpu.memory_space<vmem>>, %arg9: memref<2x8x128xf32, #tpu.memory_space<vmem>>, %arg10: memref<2x2x32xf32, #tpu.memory_space<vmem>>, %arg11: memref<8x2x32xf32, #tpu.memory_space<vmem>>, %arg12: memref<2x8x32xf32, #tpu.memory_space<vmem>>, %arg13: memref<2x64xf32, #tpu.memory_space<vmem>>, %arg14: memref<2x64xf32, #tpu.memory_space<vmem>>) attributes {dimension_semantics = [], scalar_prefetch = 0 : i64, scratch_operands = 4 : i64, tpu.core_type = #tpu.core_type<tc>} {
    %c0 = arith.constant 0 : index
    %c0_0 = arith.constant 0 : index
    %0 = memref.load %arg0[%c0, %c0_0] : memref<2x8xi32, #tpu.memory_space<smem>>
    %1 = arith.index_cast %0 : i32 to index
    %c0_1 = arith.constant 0 : index
    %2 = vector.load %arg1[%1, %c0_1] : memref<64x32xf32, #tpu.memory_space<vmem>>, vector<1x32xf32>
    %c0_2 = arith.constant 0 : index
    %c0_3 = arith.constant 0 : index
    %c0_4 = arith.constant 0 : index
    %3 = vector.load %arg11[%c0_2, %c0_3, %c0_4] : memref<8x2x32xf32, #tpu.memory_space<vmem>>, vector<1x1x32xf32>
    %4 = vector.shape_cast %3 : vector<1x1x32xf32> to vector<1x32xf32>
    %5 = vector.shape_cast %2 : vector<1x32xf32> to vector<1x1x32xf32>
    tpu.vector_store %arg11[%c0_2, %c0_3, %c0_4], %5 {strides = array<i32>} : memref<8x2x32xf32, #tpu.memory_space<vmem>>, vector<1x1x32xf32>,
    %c1 = arith.constant 1 : index
    %c0_5 = arith.constant 0 : index
    %6 = memref.load %arg0[%c1, %c0_5] : memref<2x8xi32, #tpu.memory_space<smem>>
    %7 = arith.index_cast %6 : i32 to index
    %c0_6 = arith.constant 0 : index
    %8 = vector.load %arg1[%7, %c0_6] : memref<64x32xf32, #tpu.memory_space<vmem>>, vector<1x32xf32>
    %c0_7 = arith.constant 0 : index
    %c1_8 = arith.constant 1 : index
    %c0_9 = arith.constant 0 : index
    %9 = vector.load %arg11[%c0_7, %c1_8, %c0_9] : memref<8x2x32xf32, #tpu.memory_space<vmem>>, vector<1x1x32xf32>
    %10 = vector.shape_cast %9 : vector<1x1x32xf32> to vector<1x32xf32>
    %11 = vector.shape_cast %8 : vector<1x32xf32> to vector<1x1x32xf32>
    tpu.vector_store %arg11[%c0_7, %c1_8, %c0_9], %11 {strides = array<i32>} : memref<8x2x32xf32, #tpu.memory_space<vmem>>, vector<1x1x32xf32>,
    %c0_10 = arith.constant 0 : index
    %c1_11 = arith.constant 1 : index
    %12 = memref.load %arg0[%c0_10, %c1_11] : memref<2x8xi32, #tpu.memory_space<smem>>
    %13 = arith.index_cast %12 : i32 to index
    %c0_12 = arith.constant 0 : index
    %14 = vector.load %arg1[%13, %c0_12] : memref<64x32xf32, #tpu.memory_space<vmem>>, vector<1x32xf32>
    %c1_13 = arith.constant 1 : index
    %c0_14 = arith.constant 0 : index
    %c0_15 = arith.constant 0 : index
    %15 = vector.load %arg11[%c1_13, %c0_14, %c0_15] : memref<8x2x32xf32, #tpu.memory_space<vmem>>, vector<1x1x32xf32>
    %16 = vector.shape_cast %15 : vector<1x1x32xf32> to vector<1x32xf32>
    %17 = vector.shape_cast %14 : vector<1x32xf32> to vector<1x1x32xf32>
    tpu.vector_store %arg11[%c1_13, %c0_14, %c0_15], %17 {strides = array<i32>} : memref<8x2x32xf32, #tpu.memory_space<vmem>>, vector<1x1x32xf32>,
    %c1_16 = arith.constant 1 : index
    %c1_17 = arith.constant 1 : index
    %18 = memref.load %arg0[%c1_16, %c1_17] : memref<2x8xi32, #tpu.memory_space<smem>>
    %19 = arith.index_cast %18 : i32 to index
    %c0_18 = arith.constant 0 : index
    %20 = vector.load %arg1[%19, %c0_18] : memref<64x32xf32, #tpu.memory_space<vmem>>, vector<1x32xf32>
    %c1_19 = arith.constant 1 : index
    %c1_20 = arith.constant 1 : index
    %c0_21 = arith.constant 0 : index
    %21 = vector.load %arg11[%c1_19, %c1_20, %c0_21] : memref<8x2x32xf32, #tpu.memory_space<vmem>>, vector<1x1x32xf32>
    %22 = vector.shape_cast %21 : vector<1x1x32xf32> to vector<1x32xf32>
    %23 = vector.shape_cast %20 : vector<1x32xf32> to vector<1x1x32xf32>
    tpu.vector_store %arg11[%c1_19, %c1_20, %c0_21], %23 {strides = array<i32>} : memref<8x2x32xf32, #tpu.memory_space<vmem>>, vector<1x1x32xf32>,
    %c0_22 = arith.constant 0 : index
    %c2 = arith.constant 2 : index
    %24 = memref.load %arg0[%c0_22, %c2] : memref<2x8xi32, #tpu.memory_space<smem>>
    %25 = arith.index_cast %24 : i32 to index
    %c0_23 = arith.constant 0 : index
    %26 = vector.load %arg1[%25, %c0_23] : memref<64x32xf32, #tpu.memory_space<vmem>>, vector<1x32xf32>
    %c2_24 = arith.constant 2 : index
    %c0_25 = arith.constant 0 : index
    %c0_26 = arith.constant 0 : index
    %27 = vector.load %arg11[%c2_24, %c0_25, %c0_26] : memref<8x2x32xf32, #tpu.memory_space<vmem>>, vector<1x1x32xf32>
    %28 = vector.shape_cast %27 : vector<1x1x32xf32> to vector<1x32xf32>
    %29 = vector.shape_cast %26 : vector<1x32xf32> to vector<1x1x32xf32>
    tpu.vector_store %arg11[%c2_24, %c0_25, %c0_26], %29 {strides = array<i32>} : memref<8x2x32xf32, #tpu.memory_space<vmem>>, vector<1x1x32xf32>,
    %c1_27 = arith.constant 1 : index
    %c2_28 = arith.constant 2 : index
    %30 = memref.load %arg0[%c1_27, %c2_28] : memref<2x8xi32, #tpu.memory_space<smem>>
    %31 = arith.index_cast %30 : i32 to index
    %c0_29 = arith.constant 0 : index
    %32 = vector.load %arg1[%31, %c0_29] : memref<64x32xf32, #tpu.memory_space<vmem>>, vector<1x32xf32>
    %c2_30 = arith.constant 2 : index
    %c1_31 = arith.constant 1 : index
    %c0_32 = arith.constant 0 : index
    %33 = vector.load %arg11[%c2_30, %c1_31, %c0_32] : memref<8x2x32xf32, #tpu.memory_space<vmem>>, vector<1x1x32xf32>
    %34 = vector.shape_cast %33 : vector<1x1x32xf32> to vector<1x32xf32>
    %35 = vector.shape_cast %32 : vector<1x32xf32> to vector<1x1x32xf32>
    tpu.vector_store %arg11[%c2_30, %c1_31, %c0_32], %35 {strides = array<i32>} : memref<8x2x32xf32, #tpu.memory_space<vmem>>, vector<1x1x32xf32>,
    %c0_33 = arith.constant 0 : index
    %c3 = arith.constant 3 : index
    %36 = memref.load %arg0[%c0_33, %c3] : memref<2x8xi32, #tpu.memory_space<smem>>
    %37 = arith.index_cast %36 : i32 to index
    %c0_34 = arith.constant 0 : index
    %38 = vector.load %arg1[%37, %c0_34] : memref<64x32xf32, #tpu.memory_space<vmem>>, vector<1x32xf32>
    %c3_35 = arith.constant 3 : index
    %c0_36 = arith.constant 0 : index
    %c0_37 = arith.constant 0 : index
    %39 = vector.load %arg11[%c3_35, %c0_36, %c0_37] : memref<8x2x32xf32, #tpu.memory_space<vmem>>, vector<1x1x32xf32>
    %40 = vector.shape_cast %39 : vector<1x1x32xf32> to vector<1x32xf32>
    %41 = vector.shape_cast %38 : vector<1x32xf32> to vector<1x1x32xf32>
    tpu.vector_store %arg11[%c3_35, %c0_36, %c0_37], %41 {strides = array<i32>} : memref<8x2x32xf32, #tpu.memory_space<vmem>>, vector<1x1x32xf32>,
    %c1_38 = arith.constant 1 : index
    %c3_39 = arith.constant 3 : index
    %42 = memref.load %arg0[%c1_38, %c3_39] : memref<2x8xi32, #tpu.memory_space<smem>>
    %43 = arith.index_cast %42 : i32 to index
    %c0_40 = arith.constant 0 : index
    %44 = vector.load %arg1[%43, %c0_40] : memref<64x32xf32, #tpu.memory_space<vmem>>, vector<1x32xf32>
    %c3_41 = arith.constant 3 : index
    %c1_42 = arith.constant 1 : index
    %c0_43 = arith.constant 0 : index
    %45 = vector.load %arg11[%c3_41, %c1_42, %c0_43] : memref<8x2x32xf32, #tpu.memory_space<vmem>>, vector<1x1x32xf32>
    %46 = vector.shape_cast %45 : vector<1x1x32xf32> to vector<1x32xf32>
    %47 = vector.shape_cast %44 : vector<1x32xf32> to vector<1x1x32xf32>
    tpu.vector_store %arg11[%c3_41, %c1_42, %c0_43], %47 {strides = array<i32>} : memref<8x2x32xf32, #tpu.memory_space<vmem>>, vector<1x1x32xf32>,
    %c0_44 = arith.constant 0 : index
    %c4 = arith.constant 4 : index
    %48 = memref.load %arg0[%c0_44, %c4] : memref<2x8xi32, #tpu.memory_space<smem>>
    %49 = arith.index_cast %48 : i32 to index
    %c0_45 = arith.constant 0 : index
    %50 = vector.load %arg1[%49, %c0_45] : memref<64x32xf32, #tpu.memory_space<vmem>>, vector<1x32xf32>
    %c4_46 = arith.constant 4 : index
    %c0_47 = arith.constant 0 : index
    %c0_48 = arith.constant 0 : index
    %51 = vector.load %arg11[%c4_46, %c0_47, %c0_48] : memref<8x2x32xf32, #tpu.memory_space<vmem>>, vector<1x1x32xf32>
    %52 = vector.shape_cast %51 : vector<1x1x32xf32> to vector<1x32xf32>
    %53 = vector.shape_cast %50 : vector<1x32xf32> to vector<1x1x32xf32>
    tpu.vector_store %arg11[%c4_46, %c0_47, %c0_48], %53 {strides = array<i32>} : memref<8x2x32xf32, #tpu.memory_space<vmem>>, vector<1x1x32xf32>,
    %c1_49 = arith.constant 1 : index
    %c4_50 = arith.constant 4 : index
    %54 = memref.load %arg0[%c1_49, %c4_50] : memref<2x8xi32, #tpu.memory_space<smem>>
    %55 = arith.index_cast %54 : i32 to index
    %c0_51 = arith.constant 0 : index
    %56 = vector.load %arg1[%55, %c0_51] : memref<64x32xf32, #tpu.memory_space<vmem>>, vector<1x32xf32>
    %c4_52 = arith.constant 4 : index
    %c1_53 = arith.constant 1 : index
    %c0_54 = arith.constant 0 : index
    %57 = vector.load %arg11[%c4_52, %c1_53, %c0_54] : memref<8x2x32xf32, #tpu.memory_space<vmem>>, vector<1x1x32xf32>
    %58 = vector.shape_cast %57 : vector<1x1x32xf32> to vector<1x32xf32>
    %59 = vector.shape_cast %56 : vector<1x32xf32> to vector<1x1x32xf32>
    tpu.vector_store %arg11[%c4_52, %c1_53, %c0_54], %59 {strides = array<i32>} : memref<8x2x32xf32, #tpu.memory_space<vmem>>, vector<1x1x32xf32>,
    %c0_55 = arith.constant 0 : index
    %c5 = arith.constant 5 : index
    %60 = memref.load %arg0[%c0_55, %c5] : memref<2x8xi32, #tpu.memory_space<smem>>
    %61 = arith.index_cast %60 : i32 to index
    %c0_56 = arith.constant 0 : index
    %62 = vector.load %arg1[%61, %c0_56] : memref<64x32xf32, #tpu.memory_space<vmem>>, vector<1x32xf32>
    %c5_57 = arith.constant 5 : index
    %c0_58 = arith.constant 0 : index
    %c0_59 = arith.constant 0 : index
    %63 = vector.load %arg11[%c5_57, %c0_58, %c0_59] : memref<8x2x32xf32, #tpu.memory_space<vmem>>, vector<1x1x32xf32>
    %64 = vector.shape_cast %63 : vector<1x1x32xf32> to vector<1x32xf32>
    %65 = vector.shape_cast %62 : vector<1x32xf32> to vector<1x1x32xf32>
    tpu.vector_store %arg11[%c5_57, %c0_58, %c0_59], %65 {strides = array<i32>} : memref<8x2x32xf32, #tpu.memory_space<vmem>>, vector<1x1x32xf32>,
    %c1_60 = arith.constant 1 : index
    %c5_61 = arith.constant 5 : index
    %66 = memref.load %arg0[%c1_60, %c5_61] : memref<2x8xi32, #tpu.memory_space<smem>>
    %67 = arith.index_cast %66 : i32 to index
    %c0_62 = arith.constant 0 : index
    %68 = vector.load %arg1[%67, %c0_62] : memref<64x32xf32, #tpu.memory_space<vmem>>, vector<1x32xf32>
    %c5_63 = arith.constant 5 : index
    %c1_64 = arith.constant 1 : index
    %c0_65 = arith.constant 0 : index
    %69 = vector.load %arg11[%c5_63, %c1_64, %c0_65] : memref<8x2x32xf32, #tpu.memory_space<vmem>>, vector<1x1x32xf32>
    %70 = vector.shape_cast %69 : vector<1x1x32xf32> to vector<1x32xf32>
    %71 = vector.shape_cast %68 : vector<1x32xf32> to vector<1x1x32xf32>
    tpu.vector_store %arg11[%c5_63, %c1_64, %c0_65], %71 {strides = array<i32>} : memref<8x2x32xf32, #tpu.memory_space<vmem>>, vector<1x1x32xf32>,
    %c0_66 = arith.constant 0 : index
    %c6 = arith.constant 6 : index
    %72 = memref.load %arg0[%c0_66, %c6] : memref<2x8xi32, #tpu.memory_space<smem>>
    %73 = arith.index_cast %72 : i32 to index
    %c0_67 = arith.constant 0 : index
    %74 = vector.load %arg1[%73, %c0_67] : memref<64x32xf32, #tpu.memory_space<vmem>>, vector<1x32xf32>
    %c6_68 = arith.constant 6 : index
    %c0_69 = arith.constant 0 : index
    %c0_70 = arith.constant 0 : index
    %75 = vector.load %arg11[%c6_68, %c0_69, %c0_70] : memref<8x2x32xf32, #tpu.memory_space<vmem>>, vector<1x1x32xf32>
    %76 = vector.shape_cast %75 : vector<1x1x32xf32> to vector<1x32xf32>
    %77 = vector.shape_cast %74 : vector<1x32xf32> to vector<1x1x32xf32>
    tpu.vector_store %arg11[%c6_68, %c0_69, %c0_70], %77 {strides = array<i32>} : memref<8x2x32xf32, #tpu.memory_space<vmem>>, vector<1x1x32xf32>,
    %c1_71 = arith.constant 1 : index
    %c6_72 = arith.constant 6 : index
    %78 = memref.load %arg0[%c1_71, %c6_72] : memref<2x8xi32, #tpu.memory_space<smem>>
    %79 = arith.index_cast %78 : i32 to index
    %c0_73 = arith.constant 0 : index
    %80 = vector.load %arg1[%79, %c0_73] : memref<64x32xf32, #tpu.memory_space<vmem>>, vector<1x32xf32>
    %c6_74 = arith.constant 6 : index
    %c1_75 = arith.constant 1 : index
    %c0_76 = arith.constant 0 : index
    %81 = vector.load %arg11[%c6_74, %c1_75, %c0_76] : memref<8x2x32xf32, #tpu.memory_space<vmem>>, vector<1x1x32xf32>
    %82 = vector.shape_cast %81 : vector<1x1x32xf32> to vector<1x32xf32>
    %83 = vector.shape_cast %80 : vector<1x32xf32> to vector<1x1x32xf32>
    tpu.vector_store %arg11[%c6_74, %c1_75, %c0_76], %83 {strides = array<i32>} : memref<8x2x32xf32, #tpu.memory_space<vmem>>, vector<1x1x32xf32>,
    %c0_77 = arith.constant 0 : index
    %c7 = arith.constant 7 : index
    %84 = memref.load %arg0[%c0_77, %c7] : memref<2x8xi32, #tpu.memory_space<smem>>
    %85 = arith.index_cast %84 : i32 to index
    %c0_78 = arith.constant 0 : index
    %86 = vector.load %arg1[%85, %c0_78] : memref<64x32xf32, #tpu.memory_space<vmem>>, vector<1x32xf32>
    %c7_79 = arith.constant 7 : index
    %c0_80 = arith.constant 0 : index
    %c0_81 = arith.constant 0 : index
    %87 = vector.load %arg11[%c7_79, %c0_80, %c0_81] : memref<8x2x32xf32, #tpu.memory_space<vmem>>, vector<1x1x32xf32>
    %88 = vector.shape_cast %87 : vector<1x1x32xf32> to vector<1x32xf32>
    %89 = vector.shape_cast %86 : vector<1x32xf32> to vector<1x1x32xf32>
    tpu.vector_store %arg11[%c7_79, %c0_80, %c0_81], %89 {strides = array<i32>} : memref<8x2x32xf32, #tpu.memory_space<vmem>>, vector<1x1x32xf32>,
    %c1_82 = arith.constant 1 : index
    %c7_83 = arith.constant 7 : index
    %90 = memref.load %arg0[%c1_82, %c7_83] : memref<2x8xi32, #tpu.memory_space<smem>>
    %91 = arith.index_cast %90 : i32 to index
    %c0_84 = arith.constant 0 : index
    %92 = vector.load %arg1[%91, %c0_84] : memref<64x32xf32, #tpu.memory_space<vmem>>, vector<1x32xf32>
    %c7_85 = arith.constant 7 : index
    %c1_86 = arith.constant 1 : index
    %c0_87 = arith.constant 0 : index
    %93 = vector.load %arg11[%c7_85, %c1_86, %c0_87] : memref<8x2x32xf32, #tpu.memory_space<vmem>>, vector<1x1x32xf32>
    %94 = vector.shape_cast %93 : vector<1x1x32xf32> to vector<1x32xf32>
    %95 = vector.shape_cast %92 : vector<1x32xf32> to vector<1x1x32xf32>
    tpu.vector_store %arg11[%c7_85, %c1_86, %c0_87], %95 {strides = array<i32>} : memref<8x2x32xf32, #tpu.memory_space<vmem>>, vector<1x1x32xf32>,
    %c0_88 = arith.constant 0 : index
    %c0_89 = arith.constant 0 : index
    %96 = vector.load %arg3[%c0_88, %c0_89] : memref<64x32xf32, #tpu.memory_space<vmem>>, vector<64x32xf32>
    %c0_90 = arith.constant 0 : index
    %c0_91 = arith.constant 0 : index
    %97 = vector.load %arg5[%c0_90, %c0_91] : memref<64x32xf32, #tpu.memory_space<vmem>>, vector<64x32xf32>
    %c0_92 = arith.constant 0 : index
    %c0_93 = arith.constant 0 : index
    %98 = vector.load %arg4[%c0_92, %c0_93] : memref<1x32xf32, #tpu.memory_space<vmem>>, vector<1x32xf32>
    %c0_94 = arith.constant 0 : index
    %c0_95 = arith.constant 0 : index
    %99 = vector.load %arg6[%c0_94, %c0_95] : memref<1x32xf32, #tpu.memory_space<vmem>>, vector<1x32xf32>
    %c0_96 = arith.constant 0 : index
    %c0_97 = arith.constant 0 : index
    %c0_98 = arith.constant 0 : index
    %100 = vector.load %arg2[%c0_96, %c0_97, %c0_98] : memref<2x2x32xf32, #tpu.memory_space<vmem>>, vector<1x2x32xf32>
    %101 = vector.shape_cast %100 : vector<1x2x32xf32> to vector<2x32xf32>
    %c0_99 = arith.constant 0 : index
    %c32 = arith.constant 32 : index
    %102 = vector.load %arg13[%c0_99, %c32] : memref<2x64xf32, #tpu.memory_space<vmem>>, vector<2x32xf32>
    tpu.vector_store %arg13[%c0_99, %c32], %101 {strides = array<i32>} : memref<2x64xf32, #tpu.memory_space<vmem>>, vector<2x32xf32>,
    %c1_100 = arith.constant 1 : index
    %c0_101 = arith.constant 0 : index
    %c0_102 = arith.constant 0 : index
    %103 = vector.load %arg2[%c1_100, %c0_101, %c0_102] : memref<2x2x32xf32, #tpu.memory_space<vmem>>, vector<1x2x32xf32>
    %104 = vector.shape_cast %103 : vector<1x2x32xf32> to vector<2x32xf32>
    %c0_103 = arith.constant 0 : index
    %c32_104 = arith.constant 32 : index
    %105 = vector.load %arg14[%c0_103, %c32_104] : memref<2x64xf32, #tpu.memory_space<vmem>>, vector<2x32xf32>
    tpu.vector_store %arg14[%c0_103, %c32_104], %104 {strides = array<i32>} : memref<2x64xf32, #tpu.memory_space<vmem>>, vector<2x32xf32>,
    %c0_105 = arith.constant 0 : index
    %c0_106 = arith.constant 0 : index
    %c0_107 = arith.constant 0 : index
    %106 = vector.load %arg11[%c0_105, %c0_106, %c0_107] : memref<8x2x32xf32, #tpu.memory_space<vmem>>, vector<1x2x32xf32>
    %107 = vector.shape_cast %106 : vector<1x2x32xf32> to vector<2x32xf32>
    %c0_108 = arith.constant 0 : index
    %c0_109 = arith.constant 0 : index
    %108 = vector.load %arg13[%c0_108, %c0_109] : memref<2x64xf32, #tpu.memory_space<vmem>>, vector<2x32xf32>
    tpu.vector_store %arg13[%c0_108, %c0_109], %107 {strides = array<i32>} : memref<2x64xf32, #tpu.memory_space<vmem>>, vector<2x32xf32>,
    %c0_110 = arith.constant 0 : index
    %c0_111 = arith.constant 0 : index
    %109 = vector.load %arg13[%c0_110, %c0_111] : memref<2x64xf32, #tpu.memory_space<vmem>>, vector<2x64xf32>
    %cst = arith.constant dense<0.000000e+00> : vector<2x32xf32>
    %110 = tpu.matmul %109, %96, %cst {dimension_numbers = #tpu.dot_dimension_numbers<[1], [0], [0], [1], [0, 0, 1, 1], [], []>} : vector<2x64xf32>, vector<64x32xf32>, vector<2x32xf32> -> vector<2x32xf32>
    %111 = vector.broadcast %98 : vector<1x32xf32> to vector<2x32xf32>
    %112 = arith.addf %110, %111 : vector<2x32xf32>
    %113 = math.tanh %112 : vector<2x32xf32>
    %c0_112 = arith.constant 0 : index
    %c32_113 = arith.constant 32 : index
    %114 = vector.load %arg13[%c0_112, %c32_113] : memref<2x64xf32, #tpu.memory_space<vmem>>, vector<2x32xf32>
    tpu.vector_store %arg13[%c0_112, %c32_113], %113 {strides = array<i32>} : memref<2x64xf32, #tpu.memory_space<vmem>>, vector<2x32xf32>,
    %c0_114 = arith.constant 0 : index
    %c0_115 = arith.constant 0 : index
    %115 = vector.load %arg14[%c0_114, %c0_115] : memref<2x64xf32, #tpu.memory_space<vmem>>, vector<2x32xf32>
    tpu.vector_store %arg14[%c0_114, %c0_115], %113 {strides = array<i32>} : memref<2x64xf32, #tpu.memory_space<vmem>>, vector<2x32xf32>,
    %c0_116 = arith.constant 0 : index
    %c0_117 = arith.constant 0 : index
    %116 = vector.load %arg14[%c0_116, %c0_117] : memref<2x64xf32, #tpu.memory_space<vmem>>, vector<2x64xf32>
    %cst_118 = arith.constant dense<0.000000e+00> : vector<2x32xf32>
    %117 = tpu.matmul %116, %97, %cst_118 {dimension_numbers = #tpu.dot_dimension_numbers<[1], [0], [0], [1], [0, 0, 1, 1], [], []>} : vector<2x64xf32>, vector<64x32xf32>, vector<2x32xf32> -> vector<2x32xf32>
    %118 = vector.broadcast %99 : vector<1x32xf32> to vector<2x32xf32>
    %119 = arith.addf %117, %118 : vector<2x32xf32>
    %120 = math.tanh %119 : vector<2x32xf32>
    %c0_119 = arith.constant 0 : index
    %c32_120 = arith.constant 32 : index
    %121 = vector.load %arg14[%c0_119, %c32_120] : memref<2x64xf32, #tpu.memory_space<vmem>>, vector<2x32xf32>
    tpu.vector_store %arg14[%c0_119, %c32_120], %120 {strides = array<i32>} : memref<2x64xf32, #tpu.memory_space<vmem>>, vector<2x32xf32>,
    %c0_121 = arith.constant 0 : index
    %c0_122 = arith.constant 0 : index
    %c0_123 = arith.constant 0 : index
    %122 = vector.load %arg12[%c0_121, %c0_122, %c0_123] : memref<2x8x32xf32, #tpu.memory_space<vmem>>, vector<2x1x32xf32>
    %123 = vector.shape_cast %122 : vector<2x1x32xf32> to vector<2x32xf32>
    %124 = vector.shape_cast %120 : vector<2x32xf32> to vector<2x1x32xf32>
    tpu.vector_store %arg12[%c0_121, %c0_122, %c0_123], %124 {strides = array<i32>} : memref<2x8x32xf32, #tpu.memory_space<vmem>>, vector<2x1x32xf32>,
    %c1_124 = arith.constant 1 : index
    %c0_125 = arith.constant 0 : index
    %c0_126 = arith.constant 0 : index
    %125 = vector.load %arg11[%c1_124, %c0_125, %c0_126] : memref<8x2x32xf32, #tpu.memory_space<vmem>>, vector<1x2x32xf32>
    %126 = vector.shape_cast %125 : vector<1x2x32xf32> to vector<2x32xf32>
    %c0_127 = arith.constant 0 : index
    %c0_128 = arith.constant 0 : index
    %127 = vector.load %arg13[%c0_127, %c0_128] : memref<2x64xf32, #tpu.memory_space<vmem>>, vector<2x32xf32>
    tpu.vector_store %arg13[%c0_127, %c0_128], %126 {strides = array<i32>} : memref<2x64xf32, #tpu.memory_space<vmem>>, vector<2x32xf32>,
    %c0_129 = arith.constant 0 : index
    %c0_130 = arith.constant 0 : index
    %128 = vector.load %arg13[%c0_129, %c0_130] : memref<2x64xf32, #tpu.memory_space<vmem>>, vector<2x64xf32>
    %cst_131 = arith.constant dense<0.000000e+00> : vector<2x32xf32>
    %129 = tpu.matmul %128, %96, %cst_131 {dimension_numbers = #tpu.dot_dimension_numbers<[1], [0], [0], [1], [0, 0, 1, 1], [], []>} : vector<2x64xf32>, vector<64x32xf32>, vector<2x32xf32> -> vector<2x32xf32>
    %130 = vector.broadcast %98 : vector<1x32xf32> to vector<2x32xf32>
    %131 = arith.addf %129, %130 : vector<2x32xf32>
    %132 = math.tanh %131 : vector<2x32xf32>
    %c0_132 = arith.constant 0 : index
    %c32_133 = arith.constant 32 : index
    %133 = vector.load %arg13[%c0_132, %c32_133] : memref<2x64xf32, #tpu.memory_space<vmem>>, vector<2x32xf32>
    tpu.vector_store %arg13[%c0_132, %c32_133], %132 {strides = array<i32>} : memref<2x64xf32, #tpu.memory_space<vmem>>, vector<2x32xf32>,
    %c0_134 = arith.constant 0 : index
    %c0_135 = arith.constant 0 : index
    %134 = vector.load %arg14[%c0_134, %c0_135] : memref<2x64xf32, #tpu.memory_space<vmem>>, vector<2x32xf32>
    tpu.vector_store %arg14[%c0_134, %c0_135], %132 {strides = array<i32>} : memref<2x64xf32, #tpu.memory_space<vmem>>, vector<2x32xf32>,
    %c0_136 = arith.constant 0 : index
    %c0_137 = arith.constant 0 : index
    %135 = vector.load %arg14[%c0_136, %c0_137] : memref<2x64xf32, #tpu.memory_space<vmem>>, vector<2x64xf32>
    %cst_138 = arith.constant dense<0.000000e+00> : vector<2x32xf32>
    %136 = tpu.matmul %135, %97, %cst_138 {dimension_numbers = #tpu.dot_dimension_numbers<[1], [0], [0], [1], [0, 0, 1, 1], [], []>} : vector<2x64xf32>, vector<64x32xf32>, vector<2x32xf32> -> vector<2x32xf32>
    %137 = vector.broadcast %99 : vector<1x32xf32> to vector<2x32xf32>
    %138 = arith.addf %136, %137 : vector<2x32xf32>
    %139 = math.tanh %138 : vector<2x32xf32>
    %c0_139 = arith.constant 0 : index
    %c32_140 = arith.constant 32 : index
    %140 = vector.load %arg14[%c0_139, %c32_140] : memref<2x64xf32, #tpu.memory_space<vmem>>, vector<2x32xf32>
    tpu.vector_store %arg14[%c0_139, %c32_140], %139 {strides = array<i32>} : memref<2x64xf32, #tpu.memory_space<vmem>>, vector<2x32xf32>,
    %c0_141 = arith.constant 0 : index
    %c1_142 = arith.constant 1 : index
    %c0_143 = arith.constant 0 : index
    %141 = vector.load %arg12[%c0_141, %c1_142, %c0_143] : memref<2x8x32xf32, #tpu.memory_space<vmem>>, vector<2x1x32xf32>
    %142 = vector.shape_cast %141 : vector<2x1x32xf32> to vector<2x32xf32>
    %143 = vector.shape_cast %139 : vector<2x32xf32> to vector<2x1x32xf32>
    tpu.vector_store %arg12[%c0_141, %c1_142, %c0_143], %143 {strides = array<i32>} : memref<2x8x32xf32, #tpu.memory_space<vmem>>, vector<2x1x32xf32>,
    %c2_144 = arith.constant 2 : index
    %c0_145 = arith.constant 0 : index
    %c0_146 = arith.constant 0 : index
    %144 = vector.load %arg11[%c2_144, %c0_145, %c0_146] : memref<8x2x32xf32, #tpu.memory_space<vmem>>, vector<1x2x32xf32>
    %145 = vector.shape_cast %144 : vector<1x2x32xf32> to vector<2x32xf32>
    %c0_147 = arith.constant 0 : index
    %c0_148 = arith.constant 0 : index
    %146 = vector.load %arg13[%c0_147, %c0_148] : memref<2x64xf32, #tpu.memory_space<vmem>>, vector<2x32xf32>
    tpu.vector_store %arg13[%c0_147, %c0_148], %145 {strides = array<i32>} : memref<2x64xf32, #tpu.memory_space<vmem>>, vector<2x32xf32>,
    %c0_149 = arith.constant 0 : index
    %c0_150 = arith.constant 0 : index
    %147 = vector.load %arg13[%c0_149, %c0_150] : memref<2x64xf32, #tpu.memory_space<vmem>>, vector<2x64xf32>
    %cst_151 = arith.constant dense<0.000000e+00> : vector<2x32xf32>
    %148 = tpu.matmul %147, %96, %cst_151 {dimension_numbers = #tpu.dot_dimension_numbers<[1], [0], [0], [1], [0, 0, 1, 1], [], []>} : vector<2x64xf32>, vector<64x32xf32>, vector<2x32xf32> -> vector<2x32xf32>
    %149 = vector.broadcast %98 : vector<1x32xf32> to vector<2x32xf32>
    %150 = arith.addf %148, %149 : vector<2x32xf32>
    %151 = math.tanh %150 : vector<2x32xf32>
    %c0_152 = arith.constant 0 : index
    %c32_153 = arith.constant 32 : index
    %152 = vector.load %arg13[%c0_152, %c32_153] : memref<2x64xf32, #tpu.memory_space<vmem>>, vector<2x32xf32>
    tpu.vector_store %arg13[%c0_152, %c32_153], %151 {strides = array<i32>} : memref<2x64xf32, #tpu.memory_space<vmem>>, vector<2x32xf32>,
    %c0_154 = arith.constant 0 : index
    %c0_155 = arith.constant 0 : index
    %153 = vector.load %arg14[%c0_154, %c0_155] : memref<2x64xf32, #tpu.memory_space<vmem>>, vector<2x32xf32>
    tpu.vector_store %arg14[%c0_154, %c0_155], %151 {strides = array<i32>} : memref<2x64xf32, #tpu.memory_space<vmem>>, vector<2x32xf32>,
    %c0_156 = arith.constant 0 : index
    %c0_157 = arith.constant 0 : index
    %154 = vector.load %arg14[%c0_156, %c0_157] : memref<2x64xf32, #tpu.memory_space<vmem>>, vector<2x64xf32>
    %cst_158 = arith.constant dense<0.000000e+00> : vector<2x32xf32>
    %155 = tpu.matmul %154, %97, %cst_158 {dimension_numbers = #tpu.dot_dimension_numbers<[1], [0], [0], [1], [0, 0, 1, 1], [], []>} : vector<2x64xf32>, vector<64x32xf32>, vector<2x32xf32> -> vector<2x32xf32>
    %156 = vector.broadcast %99 : vector<1x32xf32> to vector<2x32xf32>
    %157 = arith.addf %155, %156 : vector<2x32xf32>
    %158 = math.tanh %157 : vector<2x32xf32>
    %c0_159 = arith.constant 0 : index
    %c32_160 = arith.constant 32 : index
    %159 = vector.load %arg14[%c0_159, %c32_160] : memref<2x64xf32, #tpu.memory_space<vmem>>, vector<2x32xf32>
    tpu.vector_store %arg14[%c0_159, %c32_160], %158 {strides = array<i32>} : memref<2x64xf32, #tpu.memory_space<vmem>>, vector<2x32xf32>,
    %c0_161 = arith.constant 0 : index
    %c2_162 = arith.constant 2 : index
    %c0_163 = arith.constant 0 : index
    %160 = vector.load %arg12[%c0_161, %c2_162, %c0_163] : memref<2x8x32xf32, #tpu.memory_space<vmem>>, vector<2x1x32xf32>
    %161 = vector.shape_cast %160 : vector<2x1x32xf32> to vector<2x32xf32>
    %162 = vector.shape_cast %158 : vector<2x32xf32> to vector<2x1x32xf32>
    tpu.vector_store %arg12[%c0_161, %c2_162, %c0_163], %162 {strides = array<i32>} : memref<2x8x32xf32, #tpu.memory_space<vmem>>, vector<2x1x32xf32>,
    %c3_164 = arith.constant 3 : index
    %c0_165 = arith.constant 0 : index
    %c0_166 = arith.constant 0 : index
    %163 = vector.load %arg11[%c3_164, %c0_165, %c0_166] : memref<8x2x32xf32, #tpu.memory_space<vmem>>, vector<1x2x32xf32>
    %164 = vector.shape_cast %163 : vector<1x2x32xf32> to vector<2x32xf32>
    %c0_167 = arith.constant 0 : index
    %c0_168 = arith.constant 0 : index
    %165 = vector.load %arg13[%c0_167, %c0_168] : memref<2x64xf32, #tpu.memory_space<vmem>>, vector<2x32xf32>
    tpu.vector_store %arg13[%c0_167, %c0_168], %164 {strides = array<i32>} : memref<2x64xf32, #tpu.memory_space<vmem>>, vector<2x32xf32>,
    %c0_169 = arith.constant 0 : index
    %c0_170 = arith.constant 0 : index
    %166 = vector.load %arg13[%c0_169, %c0_170] : memref<2x64xf32, #tpu.memory_space<vmem>>, vector<2x64xf32>
    %cst_171 = arith.constant dense<0.000000e+00> : vector<2x32xf32>
    %167 = tpu.matmul %166, %96, %cst_171 {dimension_numbers = #tpu.dot_dimension_numbers<[1], [0], [0], [1], [0, 0, 1, 1], [], []>} : vector<2x64xf32>, vector<64x32xf32>, vector<2x32xf32> -> vector<2x32xf32>
    %168 = vector.broadcast %98 : vector<1x32xf32> to vector<2x32xf32>
    %169 = arith.addf %167, %168 : vector<2x32xf32>
    %170 = math.tanh %169 : vector<2x32xf32>
    %c0_172 = arith.constant 0 : index
    %c32_173 = arith.constant 32 : index
    %171 = vector.load %arg13[%c0_172, %c32_173] : memref<2x64xf32, #tpu.memory_space<vmem>>, vector<2x32xf32>
    tpu.vector_store %arg13[%c0_172, %c32_173], %170 {strides = array<i32>} : memref<2x64xf32, #tpu.memory_space<vmem>>, vector<2x32xf32>,
    %c0_174 = arith.constant 0 : index
    %c0_175 = arith.constant 0 : index
    %172 = vector.load %arg14[%c0_174, %c0_175] : memref<2x64xf32, #tpu.memory_space<vmem>>, vector<2x32xf32>
    tpu.vector_store %arg14[%c0_174, %c0_175], %170 {strides = array<i32>} : memref<2x64xf32, #tpu.memory_space<vmem>>, vector<2x32xf32>,
    %c0_176 = arith.constant 0 : index
    %c0_177 = arith.constant 0 : index
    %173 = vector.load %arg14[%c0_176, %c0_177] : memref<2x64xf32, #tpu.memory_space<vmem>>, vector<2x64xf32>
    %cst_178 = arith.constant dense<0.000000e+00> : vector<2x32xf32>
    %174 = tpu.matmul %173, %97, %cst_178 {dimension_numbers = #tpu.dot_dimension_numbers<[1], [0], [0], [1], [0, 0, 1, 1], [], []>} : vector<2x64xf32>, vector<64x32xf32>, vector<2x32xf32> -> vector<2x32xf32>
    %175 = vector.broadcast %99 : vector<1x32xf32> to vector<2x32xf32>
    %176 = arith.addf %174, %175 : vector<2x32xf32>
    %177 = math.tanh %176 : vector<2x32xf32>
    %c0_179 = arith.constant 0 : index
    %c32_180 = arith.constant 32 : index
    %178 = vector.load %arg14[%c0_179, %c32_180] : memref<2x64xf32, #tpu.memory_space<vmem>>, vector<2x32xf32>
    tpu.vector_store %arg14[%c0_179, %c32_180], %177 {strides = array<i32>} : memref<2x64xf32, #tpu.memory_space<vmem>>, vector<2x32xf32>,
    %c0_181 = arith.constant 0 : index
    %c3_182 = arith.constant 3 : index
    %c0_183 = arith.constant 0 : index
    %179 = vector.load %arg12[%c0_181, %c3_182, %c0_183] : memref<2x8x32xf32, #tpu.memory_space<vmem>>, vector<2x1x32xf32>
    %180 = vector.shape_cast %179 : vector<2x1x32xf32> to vector<2x32xf32>
    %181 = vector.shape_cast %177 : vector<2x32xf32> to vector<2x1x32xf32>
    tpu.vector_store %arg12[%c0_181, %c3_182, %c0_183], %181 {strides = array<i32>} : memref<2x8x32xf32, #tpu.memory_space<vmem>>, vector<2x1x32xf32>,
    %c4_184 = arith.constant 4 : index
    %c0_185 = arith.constant 0 : index
    %c0_186 = arith.constant 0 : index
    %182 = vector.load %arg11[%c4_184, %c0_185, %c0_186] : memref<8x2x32xf32, #tpu.memory_space<vmem>>, vector<1x2x32xf32>
    %183 = vector.shape_cast %182 : vector<1x2x32xf32> to vector<2x32xf32>
    %c0_187 = arith.constant 0 : index
    %c0_188 = arith.constant 0 : index
    %184 = vector.load %arg13[%c0_187, %c0_188] : memref<2x64xf32, #tpu.memory_space<vmem>>, vector<2x32xf32>
    tpu.vector_store %arg13[%c0_187, %c0_188], %183 {strides = array<i32>} : memref<2x64xf32, #tpu.memory_space<vmem>>, vector<2x32xf32>,
    %c0_189 = arith.constant 0 : index
    %c0_190 = arith.constant 0 : index
    %185 = vector.load %arg13[%c0_189, %c0_190] : memref<2x64xf32, #tpu.memory_space<vmem>>, vector<2x64xf32>
    %cst_191 = arith.constant dense<0.000000e+00> : vector<2x32xf32>
    %186 = tpu.matmul %185, %96, %cst_191 {dimension_numbers = #tpu.dot_dimension_numbers<[1], [0], [0], [1], [0, 0, 1, 1], [], []>} : vector<2x64xf32>, vector<64x32xf32>, vector<2x32xf32> -> vector<2x32xf32>
    %187 = vector.broadcast %98 : vector<1x32xf32> to vector<2x32xf32>
    %188 = arith.addf %186, %187 : vector<2x32xf32>
    %189 = math.tanh %188 : vector<2x32xf32>
    %c0_192 = arith.constant 0 : index
    %c32_193 = arith.constant 32 : index
    %190 = vector.load %arg13[%c0_192, %c32_193] : memref<2x64xf32, #tpu.memory_space<vmem>>, vector<2x32xf32>
    tpu.vector_store %arg13[%c0_192, %c32_193], %189 {strides = array<i32>} : memref<2x64xf32, #tpu.memory_space<vmem>>, vector<2x32xf32>,
    %c0_194 = arith.constant 0 : index
    %c0_195 = arith.constant 0 : index
    %191 = vector.load %arg14[%c0_194, %c0_195] : memref<2x64xf32, #tpu.memory_space<vmem>>, vector<2x32xf32>
    tpu.vector_store %arg14[%c0_194, %c0_195], %189 {strides = array<i32>} : memref<2x64xf32, #tpu.memory_space<vmem>>, vector<2x32xf32>,
    %c0_196 = arith.constant 0 : index
    %c0_197 = arith.constant 0 : index
    %192 = vector.load %arg14[%c0_196, %c0_197] : memref<2x64xf32, #tpu.memory_space<vmem>>, vector<2x64xf32>
    %cst_198 = arith.constant dense<0.000000e+00> : vector<2x32xf32>
    %193 = tpu.matmul %192, %97, %cst_198 {dimension_numbers = #tpu.dot_dimension_numbers<[1], [0], [0], [1], [0, 0, 1, 1], [], []>} : vector<2x64xf32>, vector<64x32xf32>, vector<2x32xf32> -> vector<2x32xf32>
    %194 = vector.broadcast %99 : vector<1x32xf32> to vector<2x32xf32>
    %195 = arith.addf %193, %194 : vector<2x32xf32>
    %196 = math.tanh %195 : vector<2x32xf32>
    %c0_199 = arith.constant 0 : index
    %c32_200 = arith.constant 32 : index
    %197 = vector.load %arg14[%c0_199, %c32_200] : memref<2x64xf32, #tpu.memory_space<vmem>>, vector<2x32xf32>
    tpu.vector_store %arg14[%c0_199, %c32_200], %196 {strides = array<i32>} : memref<2x64xf32, #tpu.memory_space<vmem>>, vector<2x32xf32>,
    %c0_201 = arith.constant 0 : index
    %c4_202 = arith.constant 4 : index
    %c0_203 = arith.constant 0 : index
    %198 = vector.load %arg12[%c0_201, %c4_202, %c0_203] : memref<2x8x32xf32, #tpu.memory_space<vmem>>, vector<2x1x32xf32>
    %199 = vector.shape_cast %198 : vector<2x1x32xf32> to vector<2x32xf32>
    %200 = vector.shape_cast %196 : vector<2x32xf32> to vector<2x1x32xf32>
    tpu.vector_store %arg12[%c0_201, %c4_202, %c0_203], %200 {strides = array<i32>} : memref<2x8x32xf32, #tpu.memory_space<vmem>>, vector<2x1x32xf32>,
    %c5_204 = arith.constant 5 : index
    %c0_205 = arith.constant 0 : index
    %c0_206 = arith.constant 0 : index
    %201 = vector.load %arg11[%c5_204, %c0_205, %c0_206] : memref<8x2x32xf32, #tpu.memory_space<vmem>>, vector<1x2x32xf32>
    %202 = vector.shape_cast %201 : vector<1x2x32xf32> to vector<2x32xf32>
    %c0_207 = arith.constant 0 : index
    %c0_208 = arith.constant 0 : index
    %203 = vector.load %arg13[%c0_207, %c0_208] : memref<2x64xf32, #tpu.memory_space<vmem>>, vector<2x32xf32>
    tpu.vector_store %arg13[%c0_207, %c0_208], %202 {strides = array<i32>} : memref<2x64xf32, #tpu.memory_space<vmem>>, vector<2x32xf32>,
    %c0_209 = arith.constant 0 : index
    %c0_210 = arith.constant 0 : index
    %204 = vector.load %arg13[%c0_209, %c0_210] : memref<2x64xf32, #tpu.memory_space<vmem>>, vector<2x64xf32>
    %cst_211 = arith.constant dense<0.000000e+00> : vector<2x32xf32>
    %205 = tpu.matmul %204, %96, %cst_211 {dimension_numbers = #tpu.dot_dimension_numbers<[1], [0], [0], [1], [0, 0, 1, 1], [], []>} : vector<2x64xf32>, vector<64x32xf32>, vector<2x32xf32> -> vector<2x32xf32>
    %206 = vector.broadcast %98 : vector<1x32xf32> to vector<2x32xf32>
    %207 = arith.addf %205, %206 : vector<2x32xf32>
    %208 = math.tanh %207 : vector<2x32xf32>
    %c0_212 = arith.constant 0 : index
    %c32_213 = arith.constant 32 : index
    %209 = vector.load %arg13[%c0_212, %c32_213] : memref<2x64xf32, #tpu.memory_space<vmem>>, vector<2x32xf32>
    tpu.vector_store %arg13[%c0_212, %c32_213], %208 {strides = array<i32>} : memref<2x64xf32, #tpu.memory_space<vmem>>, vector<2x32xf32>,
    %c0_214 = arith.constant 0 : index
    %c0_215 = arith.constant 0 : index
    %210 = vector.load %arg14[%c0_214, %c0_215] : memref<2x64xf32, #tpu.memory_space<vmem>>, vector<2x32xf32>
    tpu.vector_store %arg14[%c0_214, %c0_215], %208 {strides = array<i32>} : memref<2x64xf32, #tpu.memory_space<vmem>>, vector<2x32xf32>,
    %c0_216 = arith.constant 0 : index
    %c0_217 = arith.constant 0 : index
    %211 = vector.load %arg14[%c0_216, %c0_217] : memref<2x64xf32, #tpu.memory_space<vmem>>, vector<2x64xf32>
    %cst_218 = arith.constant dense<0.000000e+00> : vector<2x32xf32>
    %212 = tpu.matmul %211, %97, %cst_218 {dimension_numbers = #tpu.dot_dimension_numbers<[1], [0], [0], [1], [0, 0, 1, 1], [], []>} : vector<2x64xf32>, vector<64x32xf32>, vector<2x32xf32> -> vector<2x32xf32>
    %213 = vector.broadcast %99 : vector<1x32xf32> to vector<2x32xf32>
    %214 = arith.addf %212, %213 : vector<2x32xf32>
    %215 = math.tanh %214 : vector<2x32xf32>
    %c0_219 = arith.constant 0 : index
    %c32_220 = arith.constant 32 : index
    %216 = vector.load %arg14[%c0_219, %c32_220] : memref<2x64xf32, #tpu.memory_space<vmem>>, vector<2x32xf32>
    tpu.vector_store %arg14[%c0_219, %c32_220], %215 {strides = array<i32>} : memref<2x64xf32, #tpu.memory_space<vmem>>, vector<2x32xf32>,
    %c0_221 = arith.constant 0 : index
    %c5_222 = arith.constant 5 : index
    %c0_223 = arith.constant 0 : index
    %217 = vector.load %arg12[%c0_221, %c5_222, %c0_223] : memref<2x8x32xf32, #tpu.memory_space<vmem>>, vector<2x1x32xf32>
    %218 = vector.shape_cast %217 : vector<2x1x32xf32> to vector<2x32xf32>
    %219 = vector.shape_cast %215 : vector<2x32xf32> to vector<2x1x32xf32>
    tpu.vector_store %arg12[%c0_221, %c5_222, %c0_223], %219 {strides = array<i32>} : memref<2x8x32xf32, #tpu.memory_space<vmem>>, vector<2x1x32xf32>,
    %c6_224 = arith.constant 6 : index
    %c0_225 = arith.constant 0 : index
    %c0_226 = arith.constant 0 : index
    %220 = vector.load %arg11[%c6_224, %c0_225, %c0_226] : memref<8x2x32xf32, #tpu.memory_space<vmem>>, vector<1x2x32xf32>
    %221 = vector.shape_cast %220 : vector<1x2x32xf32> to vector<2x32xf32>
    %c0_227 = arith.constant 0 : index
    %c0_228 = arith.constant 0 : index
    %222 = vector.load %arg13[%c0_227, %c0_228] : memref<2x64xf32, #tpu.memory_space<vmem>>, vector<2x32xf32>
    tpu.vector_store %arg13[%c0_227, %c0_228], %221 {strides = array<i32>} : memref<2x64xf32, #tpu.memory_space<vmem>>, vector<2x32xf32>,
    %c0_229 = arith.constant 0 : index
    %c0_230 = arith.constant 0 : index
    %223 = vector.load %arg13[%c0_229, %c0_230] : memref<2x64xf32, #tpu.memory_space<vmem>>, vector<2x64xf32>
    %cst_231 = arith.constant dense<0.000000e+00> : vector<2x32xf32>
    %224 = tpu.matmul %223, %96, %cst_231 {dimension_numbers = #tpu.dot_dimension_numbers<[1], [0], [0], [1], [0, 0, 1, 1], [], []>} : vector<2x64xf32>, vector<64x32xf32>, vector<2x32xf32> -> vector<2x32xf32>
    %225 = vector.broadcast %98 : vector<1x32xf32> to vector<2x32xf32>
    %226 = arith.addf %224, %225 : vector<2x32xf32>
    %227 = math.tanh %226 : vector<2x32xf32>
    %c0_232 = arith.constant 0 : index
    %c32_233 = arith.constant 32 : index
    %228 = vector.load %arg13[%c0_232, %c32_233] : memref<2x64xf32, #tpu.memory_space<vmem>>, vector<2x32xf32>
    tpu.vector_store %arg13[%c0_232, %c32_233], %227 {strides = array<i32>} : memref<2x64xf32, #tpu.memory_space<vmem>>, vector<2x32xf32>,
    %c0_234 = arith.constant 0 : index
    %c0_235 = arith.constant 0 : index
    %229 = vector.load %arg14[%c0_234, %c0_235] : memref<2x64xf32, #tpu.memory_space<vmem>>, vector<2x32xf32>
    tpu.vector_store %arg14[%c0_234, %c0_235], %227 {strides = array<i32>} : memref<2x64xf32, #tpu.memory_space<vmem>>, vector<2x32xf32>,
    %c0_236 = arith.constant 0 : index
    %c0_237 = arith.constant 0 : index
    %230 = vector.load %arg14[%c0_236, %c0_237] : memref<2x64xf32, #tpu.memory_space<vmem>>, vector<2x64xf32>
    %cst_238 = arith.constant dense<0.000000e+00> : vector<2x32xf32>
    %231 = tpu.matmul %230, %97, %cst_238 {dimension_numbers = #tpu.dot_dimension_numbers<[1], [0], [0], [1], [0, 0, 1, 1], [], []>} : vector<2x64xf32>, vector<64x32xf32>, vector<2x32xf32> -> vector<2x32xf32>
    %232 = vector.broadcast %99 : vector<1x32xf32> to vector<2x32xf32>
    %233 = arith.addf %231, %232 : vector<2x32xf32>
    %234 = math.tanh %233 : vector<2x32xf32>
    %c0_239 = arith.constant 0 : index
    %c32_240 = arith.constant 32 : index
    %235 = vector.load %arg14[%c0_239, %c32_240] : memref<2x64xf32, #tpu.memory_space<vmem>>, vector<2x32xf32>
    tpu.vector_store %arg14[%c0_239, %c32_240], %234 {strides = array<i32>} : memref<2x64xf32, #tpu.memory_space<vmem>>, vector<2x32xf32>,
    %c0_241 = arith.constant 0 : index
    %c6_242 = arith.constant 6 : index
    %c0_243 = arith.constant 0 : index
    %236 = vector.load %arg12[%c0_241, %c6_242, %c0_243] : memref<2x8x32xf32, #tpu.memory_space<vmem>>, vector<2x1x32xf32>
    %237 = vector.shape_cast %236 : vector<2x1x32xf32> to vector<2x32xf32>
    %238 = vector.shape_cast %234 : vector<2x32xf32> to vector<2x1x32xf32>
    tpu.vector_store %arg12[%c0_241, %c6_242, %c0_243], %238 {strides = array<i32>} : memref<2x8x32xf32, #tpu.memory_space<vmem>>, vector<2x1x32xf32>,
    %c7_244 = arith.constant 7 : index
    %c0_245 = arith.constant 0 : index
    %c0_246 = arith.constant 0 : index
    %239 = vector.load %arg11[%c7_244, %c0_245, %c0_246] : memref<8x2x32xf32, #tpu.memory_space<vmem>>, vector<1x2x32xf32>
    %240 = vector.shape_cast %239 : vector<1x2x32xf32> to vector<2x32xf32>
    %c0_247 = arith.constant 0 : index
    %c0_248 = arith.constant 0 : index
    %241 = vector.load %arg13[%c0_247, %c0_248] : memref<2x64xf32, #tpu.memory_space<vmem>>, vector<2x32xf32>
    tpu.vector_store %arg13[%c0_247, %c0_248], %240 {strides = array<i32>} : memref<2x64xf32, #tpu.memory_space<vmem>>, vector<2x32xf32>,
    %c0_249 = arith.constant 0 : index
    %c0_250 = arith.constant 0 : index
    %242 = vector.load %arg13[%c0_249, %c0_250] : memref<2x64xf32, #tpu.memory_space<vmem>>, vector<2x64xf32>
    %cst_251 = arith.constant dense<0.000000e+00> : vector<2x32xf32>
    %243 = tpu.matmul %242, %96, %cst_251 {dimension_numbers = #tpu.dot_dimension_numbers<[1], [0], [0], [1], [0, 0, 1, 1], [], []>} : vector<2x64xf32>, vector<64x32xf32>, vector<2x32xf32> -> vector<2x32xf32>
    %244 = vector.broadcast %98 : vector<1x32xf32> to vector<2x32xf32>
    %245 = arith.addf %243, %244 : vector<2x32xf32>
    %246 = math.tanh %245 : vector<2x32xf32>
    %c0_252 = arith.constant 0 : index
    %c32_253 = arith.constant 32 : index
    %247 = vector.load %arg13[%c0_252, %c32_253] : memref<2x64xf32, #tpu.memory_space<vmem>>, vector<2x32xf32>
    tpu.vector_store %arg13[%c0_252, %c32_253], %246 {strides = array<i32>} : memref<2x64xf32, #tpu.memory_space<vmem>>, vector<2x32xf32>,
    %c0_254 = arith.constant 0 : index
    %c0_255 = arith.constant 0 : index
    %248 = vector.load %arg14[%c0_254, %c0_255] : memref<2x64xf32, #tpu.memory_space<vmem>>, vector<2x32xf32>
    tpu.vector_store %arg14[%c0_254, %c0_255], %246 {strides = array<i32>} : memref<2x64xf32, #tpu.memory_space<vmem>>, vector<2x32xf32>,
    %c0_256 = arith.constant 0 : index
    %c0_257 = arith.constant 0 : index
    %249 = vector.load %arg14[%c0_256, %c0_257] : memref<2x64xf32, #tpu.memory_space<vmem>>, vector<2x64xf32>
    %cst_258 = arith.constant dense<0.000000e+00> : vector<2x32xf32>
    %250 = tpu.matmul %249, %97, %cst_258 {dimension_numbers = #tpu.dot_dimension_numbers<[1], [0], [0], [1], [0, 0, 1, 1], [], []>} : vector<2x64xf32>, vector<64x32xf32>, vector<2x32xf32> -> vector<2x32xf32>
    %251 = vector.broadcast %99 : vector<1x32xf32> to vector<2x32xf32>
    %252 = arith.addf %250, %251 : vector<2x32xf32>
    %253 = math.tanh %252 : vector<2x32xf32>
    %c0_259 = arith.constant 0 : index
    %c32_260 = arith.constant 32 : index
    %254 = vector.load %arg14[%c0_259, %c32_260] : memref<2x64xf32, #tpu.memory_space<vmem>>, vector<2x32xf32>
    tpu.vector_store %arg14[%c0_259, %c32_260], %253 {strides = array<i32>} : memref<2x64xf32, #tpu.memory_space<vmem>>, vector<2x32xf32>,
    %c0_261 = arith.constant 0 : index
    %c7_262 = arith.constant 7 : index
    %c0_263 = arith.constant 0 : index
    %255 = vector.load %arg12[%c0_261, %c7_262, %c0_263] : memref<2x8x32xf32, #tpu.memory_space<vmem>>, vector<2x1x32xf32>
    %256 = vector.shape_cast %255 : vector<2x1x32xf32> to vector<2x32xf32>
    %257 = vector.shape_cast %253 : vector<2x32xf32> to vector<2x1x32xf32>
    tpu.vector_store %arg12[%c0_261, %c7_262, %c0_263], %257 {strides = array<i32>} : memref<2x8x32xf32, #tpu.memory_space<vmem>>, vector<2x1x32xf32>,
    %c0_264 = arith.constant 0 : index
    %c0_265 = arith.constant 0 : index
    %c0_266 = arith.constant 0 : index
    %258 = vector.load %arg12[%c0_264, %c0_265, %c0_266] : memref<2x8x32xf32, #tpu.memory_space<vmem>>, vector<2x8x32xf32>
    %259 = vector.shape_cast %258 : vector<2x8x32xf32> to vector<16x32xf32>
    %c0_267 = arith.constant 0 : index
    %c0_268 = arith.constant 0 : index
    %260 = vector.load %arg7[%c0_267, %c0_268] : memref<32x128xf32, #tpu.memory_space<vmem>>, vector<32x128xf32>
    %cst_269 = arith.constant dense<0.000000e+00> : vector<16x128xf32>
    %261 = tpu.matmul %259, %260, %cst_269 {dimension_numbers = #tpu.dot_dimension_numbers<[1], [0], [0], [1], [0, 0, 1, 1], [], []>} : vector<16x32xf32>, vector<32x128xf32>, vector<16x128xf32> -> vector<16x128xf32>
    %c0_270 = arith.constant 0 : index
    %c0_271 = arith.constant 0 : index
    %262 = vector.load %arg8[%c0_270, %c0_271] : memref<1x128xf32, #tpu.memory_space<vmem>>, vector<1x128xf32>
    %263 = vector.broadcast %262 : vector<1x128xf32> to vector<16x128xf32>
    %264 = arith.addf %261, %263 : vector<16x128xf32>
    %265 = vector.shape_cast %264 : vector<16x128xf32> to vector<2x8x128xf32>
    %c0_272 = arith.constant 0 : index
    %c0_273 = arith.constant 0 : index
    %c0_274 = arith.constant 0 : index
    %266 = vector.load %arg9[%c0_272, %c0_273, %c0_274] : memref<2x8x128xf32, #tpu.memory_space<vmem>>, vector<2x8x128xf32>
    tpu.vector_store %arg9[%c0_272, %c0_273, %c0_274], %265 {strides = array<i32>} : memref<2x8x128xf32, #tpu.memory_space<vmem>>, vector<2x8x128xf32>,
    %c0_275 = arith.constant 0 : index
    %c0_276 = arith.constant 0 : index
    %c0_277 = arith.constant 0 : index
    %267 = vector.load %arg10[%c0_275, %c0_276, %c0_277] : memref<2x2x32xf32, #tpu.memory_space<vmem>>, vector<1x2x32xf32>
    %268 = vector.shape_cast %267 : vector<1x2x32xf32> to vector<2x32xf32>
    %269 = vector.shape_cast %246 : vector<2x32xf32> to vector<1x2x32xf32>
    tpu.vector_store %arg10[%c0_275, %c0_276, %c0_277], %269 {strides = array<i32>} : memref<2x2x32xf32, #tpu.memory_space<vmem>>, vector<1x2x32xf32>,
    %c1_278 = arith.constant 1 : index
    %c0_279 = arith.constant 0 : index
    %c0_280 = arith.constant 0 : index
    %270 = vector.load %arg10[%c1_278, %c0_279, %c0_280] : memref<2x2x32xf32, #tpu.memory_space<vmem>>, vector<1x2x32xf32>
    %271 = vector.shape_cast %270 : vector<1x2x32xf32> to vector<2x32xf32>
    %272 = vector.shape_cast %253 : vector<2x32xf32> to vector<1x2x32xf32>
    tpu.vector_store %arg10[%c1_278, %c0_279, %c0_280], %272 {strides = array<i32>} : memref<2x2x32xf32, #tpu.memory_space<vmem>>, vector<1x2x32xf32>,
    return
  }
}

</mosaic_0001>

<llo_original>
// kernel: rnn_lm_forward.1
$region0: #{rnn_lm_forward.1}
  #allocation0 [shape = 'u32[]', space=smem, size = 0x4, offset = 0x4, fixed_abs, tag = 'smem constant byte address 0x4 - core index']
  #allocation1 [shape = 'u32[72,128]{1,0:T(1,128)}', space=vmem, size = 0x9000, scoped, tag = 'internal scratch']
  #allocation2 [shape = 'f32[8,2,32]{2,1,0:T(2,128)}', space=vmem, size = 0x2000, scoped, tag = 'scratch operand']
  #allocation3 [shape = 'f32[2,8,32]{2,1,0:T(8,128)}', space=vmem, size = 0x2000, scoped, tag = 'scratch operand']
  #allocation4 [shape = 'f32[2,64]{1,0:T(2,128)}', space=vmem, size = 0x400, scoped, tag = 'scratch operand']
  #allocation5 [shape = 'f32[2,64]{1,0:T(2,128)}', space=vmem, size = 0x400, scoped, tag = 'scratch operand']
  %s0 = inlined_call_operand.vmem [shape: s32[2,8], index: 0, kind: input, shape index: {}]
  %s1 = inlined_call_operand.vmem [shape: f32[64,32], index: 1, kind: input, shape index: {}]
  %s2 = inlined_call_operand.vmem [shape: f32[2,2,32], index: 2, kind: input, shape index: {}]
  %s3 = inlined_call_operand.vmem [shape: f32[64,32], index: 3, kind: input, shape index: {}]
  %s4 = inlined_call_operand.vmem [shape: f32[1,32], index: 4, kind: input, shape index: {}]
  %s5 = inlined_call_operand.vmem [shape: f32[64,32], index: 5, kind: input, shape index: {}]
  %s6 = inlined_call_operand.vmem [shape: f32[1,32], index: 6, kind: input, shape index: {}]
  %s7 = inlined_call_operand.vmem [shape: f32[32,128], index: 7, kind: input, shape index: {}]
  %s8 = inlined_call_operand.vmem [shape: f32[1,128], index: 8, kind: input, shape index: {}]
  %s9 = inlined_call_operand.hbm [shape: f32[2,8,128], index: 9, kind: output, shape index: {0}]
  %s10 = inlined_call_operand.hbm [shape: f32[2,2,32], index: 10, kind: output, shape index: {1}]
  %11 = xla_tuple %s9, %s10
  %s12 = sld [smem:[#allocation0]]
  $region58: #{rnn_lm_forward.1} parent=0
    _
  %s14 = ssub.s32 1, %s12
  %s15 = scalar_select 0, %s14, %s12
  $region1: #{rnn_lm_forward.1} parent=0
    #allocation6 [shape = 'u8[1024]{0}', space=smem, size = 0x400, scoped, tag = 'input window, operand 0, single buffered']
    #allocation7 [shape = 's32[1]{0}', space=sflag, size = 0x4, scoped, tag = 'scoped memory for rnn_lm_forward.1']
    #allocation8 [shape = 's32[1]{0}', space=sflag, size = 0x4, scoped, tag = 'scoped memory for rnn_lm_forward.1']
    #allocation9 [shape = 'u8[8192]{0}', space=vmem, size = 0x2000, scoped, tag = 'output window, operand 0, single buffered']
    #allocation10 [shape = 'u8[2048]{0}', space=vmem, size = 0x800, scoped, tag = 'output window, operand 1, single buffered']
    #allocation11 [shape = 's32[1]{0}', space=sflag, size = 0x4, scoped, tag = 'scoped memory for rnn_lm_forward.1']
    %16 = vsyncpa [#allocation8], 0
    %17 = vsyncpa [#allocation7], 0
    %18 = vsyncpa [#allocation11], 0
    // Predicated region
    $region2: #{rnn_lm_forward.1} parent=1 // pred_check
      _
    $region3: #{rnn_lm_forward.1} parent=1 // pred_check_branch
      %20 = sbr.rel (0) target = $region5
    $region4: #{rnn_lm_forward.1} parent=1 // pred_region
      %22 = vsyncadd [#allocation8], 0
      %s24 = sshll.u32 %s0, 4
      %s25 = int_to_ptr.vmem [resolvable:$true] %s24
      %27 = dma.vmem_to_smem %s25, 32, [#allocation6], [#allocation8]
    $region5: #{rnn_lm_forward.1} parent=1 // pred_fallthru
      _
    // Predicated region
    $region6: #{rnn_lm_forward.1} parent=1 // pred_check
      _
    $region7: #{rnn_lm_forward.1} parent=1 // pred_check_branch
      %29 = sbr.rel (0) target = $region9
    $region8: #{rnn_lm_forward.1} parent=1 // pred_region
      _
    $region9: #{rnn_lm_forward.1} parent=1 // pred_fallthru
      _
    // Predicated region
    $region10: #{rnn_lm_forward.1} parent=1 // pred_check
      _
    $region11: #{rnn_lm_forward.1} parent=1 // pred_check_branch
      %31 = sbr.rel (0) target = $region13
    $region12: #{rnn_lm_forward.1} parent=1 // pred_region
      _
    $region13: #{rnn_lm_forward.1} parent=1 // pred_fallthru
      _
    // Predicated region
    $region14: #{rnn_lm_forward.1} parent=1 // pred_check
      _
    $region15: #{rnn_lm_forward.1} parent=1 // pred_check_branch
      %33 = sbr.rel (0) target = $region17
    $region16: #{rnn_lm_forward.1} parent=1 // pred_region
      _
    $region17: #{rnn_lm_forward.1} parent=1 // pred_fallthru
      _
    // Predicated region
    $region18: #{rnn_lm_forward.1} parent=1 // pred_check
      _
    $region19: #{rnn_lm_forward.1} parent=1 // pred_check_branch
      %35 = sbr.rel (0) target = $region21
    $region20: #{rnn_lm_forward.1} parent=1 // pred_region
      _
    $region21: #{rnn_lm_forward.1} parent=1 // pred_fallthru
      _
    // Predicated region
    $region22: #{rnn_lm_forward.1} parent=1 // pred_check
      _
    $region23: #{rnn_lm_forward.1} parent=1 // pred_check_branch
      %37 = sbr.rel (0) target = $region25
    $region24: #{rnn_lm_forward.1} parent=1 // pred_region
      _
    $region25: #{rnn_lm_forward.1} parent=1 // pred_fallthru
      _
    // Predicated region
    $region26: #{rnn_lm_forward.1} parent=1 // pred_check
      _
    $region27: #{rnn_lm_forward.1} parent=1 // pred_check_branch
      %39 = sbr.rel (0) target = $region29
    $region28: #{rnn_lm_forward.1} parent=1 // pred_region
      _
    $region29: #{rnn_lm_forward.1} parent=1 // pred_fallthru
      _
    // Predicated region
    $region30: #{rnn_lm_forward.1} parent=1 // pred_check
      _
    $region31: #{rnn_lm_forward.1} parent=1 // pred_check_branch
      %41 = sbr.rel (0) target = $region33
    $region32: #{rnn_lm_forward.1} parent=1 // pred_region
      _
    $region33: #{rnn_lm_forward.1} parent=1 // pred_fallthru
      _
    // Predicated region
    $region34: #{rnn_lm_forward.1} parent=1 // pred_check
      _
    $region35: #{rnn_lm_forward.1} parent=1 // pred_check_branch
      %43 = sbr.rel (0) target = $region37
    $region36: #{rnn_lm_forward.1} parent=1 // pred_region
      _
    $region37: #{rnn_lm_forward.1} parent=1 // pred_fallthru
      _
    // Predicated region
    $region38: #{rnn_lm_forward.1} parent=1 // pred_check
      _
    $region39: #{rnn_lm_forward.1} parent=1 // pred_check_branch
      %45 = sbr.rel (0) target = $region41
    $region40: #{rnn_lm_forward.1} parent=1 // pred_region
      %47 = dma.done [#allocation8], 32
    $region41: #{rnn_lm_forward.1} parent=1 // pred_fallthru
      _
    %48 = sfence
    %s49 = sld [smem:[#allocation6]]
    %s50 = scalar_lea.vmem %s1, %s49
    %v51 = vld [vmem:[%s50] sm:$0x1]
    %vm52 = vcmask 253952
    %53 = vst.msk [vmem:[#allocation2] sm:$0x1] %vm52, %v51
    %s54 = sld [smem:[#allocation6 + $0x80]]
    %s55 = scalar_lea.vmem %s1, %s54
    %v56 = vld [vmem:[%s55] sm:$0x1]
    %57 = vst.msk [vmem:[#allocation2 + $0x1] sm:$0x1] %vm52, %v56
    %s58 = sld [smem:[#allocation6 + $0x1]]
    %s59 = scalar_lea.vmem %s1, %s58
    %v60 = vld [vmem:[%s59] sm:$0x1]
    %s61 = scalar_lea.vmem [#allocation2], 2
    %62 = vst.msk [vmem:[%s61] sm:$0x1] %vm52, %v60
    %s63 = sld [smem:[#allocation6 + $0x81]]
    %s64 = scalar_lea.vmem %s1, %s63
    %v65 = vld [vmem:[%s64] sm:$0x1]
    %66 = vst.msk [vmem:[%s61 + $0x1] sm:$0x1] %vm52, %v65
    %s67 = sld [smem:[#allocation6 + $0x2]]
    %s68 = scalar_lea.vmem %s1, %s67
    %v69 = vld [vmem:[%s68] sm:$0x1]
    %s70 = scalar_lea.vmem [#allocation2], 4
    %71 = vst.msk [vmem:[%s70] sm:$0x1] %vm52, %v69
    %s72 = sld [smem:[#allocation6 + $0x82]]
    %s73 = scalar_lea.vmem %s1, %s72
    %v74 = vld [vmem:[%s73] sm:$0x1]
    %75 = vst.msk [vmem:[%s70 + $0x1] sm:$0x1] %vm52, %v74
    %s76 = sld [smem:[#allocation6 + $0x3]]
    %s77 = scalar_lea.vmem %s1, %s76
    %v78 = vld [vmem:[%s77] sm:$0x1]
    %s79 = scalar_lea.vmem [#allocation2], 6
    %80 = vst.msk [vmem:[%s79] sm:$0x1] %vm52, %v78
    %s81 = sld [smem:[#allocation6 + $0x83]]
    %s82 = scalar_lea.vmem %s1, %s81
    %v83 = vld [vmem:[%s82] sm:$0x1]
    %84 = vst.msk [vmem:[%s79 + $0x1] sm:$0x1] %vm52, %v83
    %s85 = sld [smem:[#allocation6 + $0x4]]
    %s86 = scalar_lea.vmem %s1, %s85
    %v87 = vld [vmem:[%s86] sm:$0x1]
    %s88 = scalar_lea.vmem [#allocation2], 8
    %89 = vst.msk [vmem:[%s88] sm:$0x1] %vm52, %v87
    %s90 = sld [smem:[#allocation6 + $0x84]]
    %s91 = scalar_lea.vmem %s1, %s90
    %v92 = vld [vmem:[%s91] sm:$0x1]
    %93 = vst.msk [vmem:[%s88 + $0x1] sm:$0x1] %vm52, %v92
    %s94 = sld [smem:[#allocation6 + $0x5]]
    %s95 = scalar_lea.vmem %s1, %s94
    %v96 = vld [vmem:[%s95] sm:$0x1]
    %s97 = scalar_lea.vmem [#allocation2], 10
    %98 = vst.msk [vmem:[%s97] sm:$0x1] %vm52, %v96
    %s99 = sld [smem:[#allocation6 + $0x85]]
    %s100 = scalar_lea.vmem %s1, %s99
    %v101 = vld [vmem:[%s100] sm:$0x1]
    %102 = vst.msk [vmem:[%s97 + $0x1] sm:$0x1] %vm52, %v101
    %s103 = sld [smem:[#allocation6 + $0x6]]
    %s104 = scalar_lea.vmem %s1, %s103
    %v105 = vld [vmem:[%s104] sm:$0x1]
    %s106 = scalar_lea.vmem [#allocation2], 12
    %107 = vst.msk [vmem:[%s106] sm:$0x1] %vm52, %v105
    %s108 = sld [smem:[#allocation6 + $0x86]]
    %s109 = scalar_lea.vmem %s1, %s108
    %v110 = vld [vmem:[%s109] sm:$0x1]
    %111 = vst.msk [vmem:[%s106 + $0x1] sm:$0x1] %vm52, %v110
    %s112 = sld [smem:[#allocation6 + $0x7]]
    %s113 = scalar_lea.vmem %s1, %s112
    %v114 = vld [vmem:[%s113] sm:$0x1]
    %s115 = scalar_lea.vmem [#allocation2], 14
    %116 = vst.msk [vmem:[%s115] sm:$0x1] %vm52, %v114
    %s117 = sld [smem:[#allocation6 + $0x87]]
    %s118 = scalar_lea.vmem %s1, %s117
    %v119 = vld [vmem:[%s118] sm:$0x1]
    %120 = vst.msk [vmem:[%s115 + $0x1] sm:$0x1] %vm52, %v119
    %v121 = vld [vmem:[%s3] sm:$0xff]
    %v122 = vld [vmem:[%s3 + $0x8] sm:$0xff]
    %v123 = vld [vmem:[%s3 + $0x10] sm:$0xff]
    %v124 = vld [vmem:[%s3 + $0x18] sm:$0xff]
    %v125 = vld [vmem:[%s3 + $0x20] sm:$0xff]
    %v126 = vld [vmem:[%s3 + $0x28] sm:$0xff]
    %v127 = vld [vmem:[%s3 + $0x30] sm:$0xff]
    %v128 = vld [vmem:[%s3 + $0x38] sm:$0xff]
    %v129 = vld [vmem:[%s5] sm:$0xff]
    %v130 = vld [vmem:[%s5 + $0x8] sm:$0xff]
    %v131 = vld [vmem:[%s5 + $0x10] sm:$0xff]
    %v132 = vld [vmem:[%s5 + $0x18] sm:$0xff]
    %v133 = vld [vmem:[%s5 + $0x20] sm:$0xff]
    %v134 = vld [vmem:[%s5 + $0x28] sm:$0xff]
    %v135 = vld [vmem:[%s5 + $0x30] sm:$0xff]
    %v136 = vld [vmem:[%s5 + $0x38] sm:$0xff]
    %v137 = vld [vmem:[%s4] sm:$0x1]
    %v138 = vld [vmem:[%s6] sm:$0x1]
    %v139 = vld [vmem:[%s2] sm:$0x3]
    %141 = vrot.lane.b32.xlu0 %v139, 32
    %v142 = vpop.permute.xlu0 %141
    %vm144 = vcmask 517376
    %145 = vst.msk [vmem:[#allocation4] sm:$0x3] %vm144, %v142
    %s146 = scalar_lea.vmem %s2, 2
    %v147 = vld [vmem:[%s146] sm:$0x3]
    %149 = vrot.lane.b32.xlu0 %v147, 32
    %v150 = vpop.permute.xlu0 %149
    %152 = vst.msk [vmem:[#allocation5] sm:$0x3] %vm144, %v150
    %v153 = vld [vmem:[#allocation2] sm:$0x3]
    %vm154 = vcmask 254976
    %155 = vst.msk [vmem:[#allocation4] sm:$0x3] %vm154, %v153
    %v156 = vld [vmem:[#allocation4] sm:$0x3]
    %v158 = vperm.slane %v137, 0
    %vm160 = vcmask 523264
    %v162 = vsel %vm160, %v156, 0
    %164 = vmatpush.msra.mxu0 0.0
    %165 = vmatpush.msra.mxu0 0.0
    %166 = vmatpush.msra.mxu0 0.0
    %167 = vmatpush.msra.mxu0 0.0
    %168 = vmatpush.msra.mxu0 0.0
    %169 = vmatpush.msra.mxu0 0.0
    %170 = vmatpush.msra.mxu0 0.0
    %171 = vmatpush.msra.mxu0 0.0
    %172 = vmatpush.msra.mxu0 %v128
    %173 = vmatpush.msra.mxu0 %v127
    %174 = vmatpush.msra.mxu0 %v126
    %175 = vmatpush.msra.mxu0 %v125
    %176 = vmatpush.msra.mxu0 %v124
    %177 = vmatpush.msra.mxu0 %v123
    %178 = vmatpush.msra.mxu0 %v122
    %179 = vmatpush.msra.mxu0 %v121
    %180 = vmatmul.f32.gmra.mxu0 %v162
    %v181 = vpop.f32.mrf.mxu0
    %v182 = vadd.f32 %v158, %v181
    %183 = vdwg.mxu0
    %v184 = vtanh.pop %v182
    %186 = vrot.lane.b32.xlu0 %v184, 32
    %v187 = vpop.permute.xlu0 %186
    %189 = vst.msk [vmem:[#allocation4] sm:$0x3] %vm144, %v187
    %190 = vst.msk [vmem:[#allocation5] sm:$0x3] %vm154, %v184
    %v191 = vld [vmem:[#allocation5] sm:$0x3]
    %v193 = vperm.slane %v138, 0
    %v196 = vsel %vm160, %v191, 0
    %198 = vmatpush.msra.mxu0 0.0
    %199 = vmatpush.msra.mxu0 0.0
    %200 = vmatpush.msra.mxu0 0.0
    %201 = vmatpush.msra.mxu0 0.0
    %202 = vmatpush.msra.mxu0 0.0
    %203 = vmatpush.msra.mxu0 0.0
    %204 = vmatpush.msra.mxu0 0.0
    %205 = vmatpush.msra.mxu0 0.0
    %206 = vmatpush.msra.mxu0 %v136
    %207 = vmatpush.msra.mxu0 %v135
    %208 = vmatpush.msra.mxu0 %v134
    %209 = vmatpush.msra.mxu0 %v133
    %210 = vmatpush.msra.mxu0 %v132
    %211 = vmatpush.msra.mxu0 %v131
    %212 = vmatpush.msra.mxu0 %v130
    %213 = vmatpush.msra.mxu0 %v129
    %214 = vmatmul.f32.gmra.mxu0 %v196
    %v215 = vpop.f32.mrf.mxu0
    %v216 = vadd.f32 %v193, %v215
    %217 = vdwg.mxu0
    %v218 = vtanh.pop %v216
    %220 = vrot.lane.b32.xlu0 %v218, 32
    %v221 = vpop.permute.xlu0 %220
    %223 = vst.msk [vmem:[#allocation5] sm:$0x3] %vm144, %v221
    %v224 = vrot.slane %v218, 1
    %226 = vst.msk [vmem:[#allocation3] sm:$0x1] %vm52, %v218
    %227 = vst.msk [vmem:[#allocation3 + $0x8] sm:$0x1] %vm52, %v224
    %v228 = vld [vmem:[%s61] sm:$0x3]
    %229 = vst.msk [vmem:[#allocation4] sm:$0x3] %vm154, %v228
    %v230 = vld [vmem:[#allocation4] sm:$0x3]
    %v232 = vsel %vm160, %v230, 0
    %234 = vmatpush.msra.mxu0 0.0
    %235 = vmatpush.msra.mxu0 0.0
    %236 = vmatpush.msra.mxu0 0.0
    %237 = vmatpush.msra.mxu0 0.0
    %238 = vmatpush.msra.mxu0 0.0
    %239 = vmatpush.msra.mxu0 0.0
    %240 = vmatpush.msra.mxu0 0.0
    %241 = vmatpush.msra.mxu0 0.0
    %242 = vmatpush.msra.mxu0 %v128
    %243 = vmatpush.msra.mxu0 %v127
    %244 = vmatpush.msra.mxu0 %v126
    %245 = vmatpush.msra.mxu0 %v125
    %246 = vmatpush.msra.mxu0 %v124
    %247 = vmatpush.msra.mxu0 %v123
    %248 = vmatpush.msra.mxu0 %v122
    %249 = vmatpush.msra.mxu0 %v121
    %250 = vmatmul.f32.gmra.mxu0 %v232
    %v251 = vpop.f32.mrf.mxu0
    %v252 = vadd.f32 %v158, %v251
    %253 = vdwg.mxu0
    %v254 = vtanh.pop %v252
    %256 = vrot.lane.b32.xlu0 %v254, 32
    %v257 = vpop.permute.xlu0 %256
    %259 = vst.msk [vmem:[#allocation4] sm:$0x3] %vm144, %v257
    %260 = vst.msk [vmem:[#allocation5] sm:$0x3] %vm154, %v254
    %v261 = vld [vmem:[#allocation5] sm:$0x3]
    %v263 = vsel %vm160, %v261, 0
    %265 = vmatpush.msra.mxu0 0.0
    %266 = vmatpush.msra.mxu0 0.0
    %267 = vmatpush.msra.mxu0 0.0
    %268 = vmatpush.msra.mxu0 0.0
    %269 = vmatpush.msra.mxu0 0.0
    %270 = vmatpush.msra.mxu0 0.0
    %271 = vmatpush.msra.mxu0 0.0
    %272 = vmatpush.msra.mxu0 0.0
    %273 = vmatpush.msra.mxu0 %v136
    %274 = vmatpush.msra.mxu0 %v135
    %275 = vmatpush.msra.mxu0 %v134
    %276 = vmatpush.msra.mxu0 %v133
    %277 = vmatpush.msra.mxu0 %v132
    %278 = vmatpush.msra.mxu0 %v131
    %279 = vmatpush.msra.mxu0 %v130
    %280 = vmatpush.msra.mxu0 %v129
    %281 = vmatmul.f32.gmra.mxu0 %v263
    %v282 = vpop.f32.mrf.mxu0
    %v283 = vadd.f32 %v193, %v282
    %284 = vdwg.mxu0
    %v285 = vtanh.pop %v283
    %287 = vrot.lane.b32.xlu0 %v285, 32
    %v288 = vpop.permute.xlu0 %287
    %290 = vst.msk [vmem:[#allocation5] sm:$0x3] %vm144, %v288
    %v291 = vrot.slane %v285, 1
    %293 = vst.msk [vmem:[#allocation3 + $0x1] sm:$0x1] %vm52, %v285
    %294 = vst.msk [vmem:[#allocation3 + $0x9] sm:$0x1] %vm52, %v291
    %v295 = vld [vmem:[%s70] sm:$0x3]
    %296 = vst.msk [vmem:[#allocation4] sm:$0x3] %vm154, %v295
    %v297 = vld [vmem:[#allocation4] sm:$0x3]
    %v299 = vsel %vm160, %v297, 0
    %301 = vmatpush.msra.mxu0 0.0
    %302 = vmatpush.msra.mxu0 0.0
    %303 = vmatpush.msra.mxu0 0.0
    %304 = vmatpush.msra.mxu0 0.0
    %305 = vmatpush.msra.mxu0 0.0
    %306 = vmatpush.msra.mxu0 0.0
    %307 = vmatpush.msra.mxu0 0.0
    %308 = vmatpush.msra.mxu0 0.0
    %309 = vmatpush.msra.mxu0 %v128
    %310 = vmatpush.msra.mxu0 %v127
    %311 = vmatpush.msra.mxu0 %v126
    %312 = vmatpush.msra.mxu0 %v125
    %313 = vmatpush.msra.mxu0 %v124
    %314 = vmatpush.msra.mxu0 %v123
    %315 = vmatpush.msra.mxu0 %v122
    %316 = vmatpush.msra.mxu0 %v121
    %317 = vmatmul.f32.gmra.mxu0 %v299
    %v318 = vpop.f32.mrf.mxu0
    %v319 = vadd.f32 %v158, %v318
    %320 = vdwg.mxu0
    %v321 = vtanh.pop %v319
    %323 = vrot.lane.b32.xlu0 %v321, 32
    %v324 = vpop.permute.xlu0 %323
    %326 = vst.msk [vmem:[#allocation4] sm:$0x3] %vm144, %v324
    %327 = vst.msk [vmem:[#allocation5] sm:$0x3] %vm154, %v321
    %v328 = vld [vmem:[#allocation5] sm:$0x3]
    %v330 = vsel %vm160, %v328, 0
    %332 = vmatpush.msra.mxu0 0.0
    %333 = vmatpush.msra.mxu0 0.0
    %334 = vmatpush.msra.mxu0 0.0
    %335 = vmatpush.msra.mxu0 0.0
    %336 = vmatpush.msra.mxu0 0.0
    %337 = vmatpush.msra.mxu0 0.0
    %338 = vmatpush.msra.mxu0 0.0
    %339 = vmatpush.msra.mxu0 0.0
    %340 = vmatpush.msra.mxu0 %v136
    %341 = vmatpush.msra.mxu0 %v135
    %342 = vmatpush.msra.mxu0 %v134
    %343 = vmatpush.msra.mxu0 %v133
    %344 = vmatpush.msra.mxu0 %v132
    %345 = vmatpush.msra.mxu0 %v131
    %346 = vmatpush.msra.mxu0 %v130
    %347 = vmatpush.msra.mxu0 %v129
    %348 = vmatmul.f32.gmra.mxu0 %v330
    %v349 = vpop.f32.mrf.mxu0
    %v350 = vadd.f32 %v193, %v349
    %351 = vdwg.mxu0
    %v352 = vtanh.pop %v350
    %354 = vrot.lane.b32.xlu0 %v352, 32
    %v355 = vpop.permute.xlu0 %354
    %357 = vst.msk [vmem:[#allocation5] sm:$0x3] %vm144, %v355
    %v358 = vrot.slane %v352, 1
    %360 = vst.msk [vmem:[#allocation3 + $0x2] sm:$0x1] %vm52, %v352
    %361 = vst.msk [vmem:[#allocation3 + $0xa] sm:$0x1] %vm52, %v358
    %v362 = vld [vmem:[%s79] sm:$0x3]
    %363 = vst.msk [vmem:[#allocation4] sm:$0x3] %vm154, %v362
    %v364 = vld [vmem:[#allocation4] sm:$0x3]
    %v366 = vsel %vm160, %v364, 0
    %368 = vmatpush.msra.mxu0 0.0
    %369 = vmatpush.msra.mxu0 0.0
    %370 = vmatpush.msra.mxu0 0.0
    %371 = vmatpush.msra.mxu0 0.0
    %372 = vmatpush.msra.mxu0 0.0
    %373 = vmatpush.msra.mxu0 0.0
    %374 = vmatpush.msra.mxu0 0.0
    %375 = vmatpush.msra.mxu0 0.0
    %376 = vmatpush.msra.mxu0 %v128
    %377 = vmatpush.msra.mxu0 %v127
    %378 = vmatpush.msra.mxu0 %v126
    %379 = vmatpush.msra.mxu0 %v125
    %380 = vmatpush.msra.mxu0 %v124
    %381 = vmatpush.msra.mxu0 %v123
    %382 = vmatpush.msra.mxu0 %v122
    %383 = vmatpush.msra.mxu0 %v121
    %384 = vmatmul.f32.gmra.mxu0 %v366
    %v385 = vpop.f32.mrf.mxu0
    %v386 = vadd.f32 %v158, %v385
    %387 = vdwg.mxu0
    %v388 = vtanh.pop %v386
    %390 = vrot.lane.b32.xlu0 %v388, 32
    %v391 = vpop.permute.xlu0 %390
    %393 = vst.msk [vmem:[#allocation4] sm:$0x3] %vm144, %v391
    %394 = vst.msk [vmem:[#allocation5] sm:$0x3] %vm154, %v388
    %v395 = vld [vmem:[#allocation5] sm:$0x3]
    %v397 = vsel %vm160, %v395, 0
    %399 = vmatpush.msra.mxu0 0.0
    %400 = vmatpush.msra.mxu0 0.0
    %401 = vmatpush.msra.mxu0 0.0
    %402 = vmatpush.msra.mxu0 0.0
    %403 = vmatpush.msra.mxu0 0.0
    %404 = vmatpush.msra.mxu0 0.0
    %405 = vmatpush.msra.mxu0 0.0
    %406 = vmatpush.msra.mxu0 0.0
    %407 = vmatpush.msra.mxu0 %v136
    %408 = vmatpush.msra.mxu0 %v135
    %409 = vmatpush.msra.mxu0 %v134
    %410 = vmatpush.msra.mxu0 %v133
    %411 = vmatpush.msra.mxu0 %v132
    %412 = vmatpush.msra.mxu0 %v131
    %413 = vmatpush.msra.mxu0 %v130
    %414 = vmatpush.msra.mxu0 %v129
    %415 = vmatmul.f32.gmra.mxu0 %v397
    %v416 = vpop.f32.mrf.mxu0
    %v417 = vadd.f32 %v193, %v416
    %418 = vdwg.mxu0
    %v419 = vtanh.pop %v417
    %421 = vrot.lane.b32.xlu0 %v419, 32
    %v422 = vpop.permute.xlu0 %421
    %424 = vst.msk [vmem:[#allocation5] sm:$0x3] %vm144, %v422
    %v425 = vrot.slane %v419, 1
    %427 = vst.msk [vmem:[#allocation3 + $0x3] sm:$0x1] %vm52, %v419
    %428 = vst.msk [vmem:[#allocation3 + $0xb] sm:$0x1] %vm52, %v425
    %v429 = vld [vmem:[%s88] sm:$0x3]
    %430 = vst.msk [vmem:[#allocation4] sm:$0x3] %vm154, %v429
    %v431 = vld [vmem:[#allocation4] sm:$0x3]
    %v433 = vsel %vm160, %v431, 0
    %435 = vmatpush.msra.mxu0 0.0
    %436 = vmatpush.msra.mxu0 0.0
    %437 = vmatpush.msra.mxu0 0.0
    %438 = vmatpush.msra.mxu0 0.0
    %439 = vmatpush.msra.mxu0 0.0
    %440 = vmatpush.msra.mxu0 0.0
    %441 = vmatpush.msra.mxu0 0.0
    %442 = vmatpush.msra.mxu0 0.0
    %443 = vmatpush.msra.mxu0 %v128
    %444 = vmatpush.msra.mxu0 %v127
    %445 = vmatpush.msra.mxu0 %v126
    %446 = vmatpush.msra.mxu0 %v125
    %447 = vmatpush.msra.mxu0 %v124
    %448 = vmatpush.msra.mxu0 %v123
    %449 = vmatpush.msra.mxu0 %v122
    %450 = vmatpush.msra.mxu0 %v121
    %451 = vmatmul.f32.gmra.mxu0 %v433
    %v452 = vpop.f32.mrf.mxu0
    %v453 = vadd.f32 %v158, %v452
    %454 = vdwg.mxu0
    %v455 = vtanh.pop %v453
    %457 = vrot.lane.b32.xlu0 %v455, 32
    %v458 = vpop.permute.xlu0 %457
    %460 = vst.msk [vmem:[#allocation4] sm:$0x3] %vm144, %v458
    %461 = vst.msk [vmem:[#allocation5] sm:$0x3] %vm154, %v455
    %v462 = vld [vmem:[#allocation5] sm:$0x3]
    %v464 = vsel %vm160, %v462, 0
    %466 = vmatpush.msra.mxu0 0.0
    %467 = vmatpush.msra.mxu0 0.0
    %468 = vmatpush.msra.mxu0 0.0
    %469 = vmatpush.msra.mxu0 0.0
    %470 = vmatpush.msra.mxu0 0.0
    %471 = vmatpush.msra.mxu0 0.0
    %472 = vmatpush.msra.mxu0 0.0
    %473 = vmatpush.msra.mxu0 0.0
    %474 = vmatpush.msra.mxu0 %v136
    %475 = vmatpush.msra.mxu0 %v135
    %476 = vmatpush.msra.mxu0 %v134
    %477 = vmatpush.msra.mxu0 %v133
    %478 = vmatpush.msra.mxu0 %v132
    %479 = vmatpush.msra.mxu0 %v131
    %480 = vmatpush.msra.mxu0 %v130
    %481 = vmatpush.msra.mxu0 %v129
    %482 = vmatmul.f32.gmra.mxu0 %v464
    %v483 = vpop.f32.mrf.mxu0
    %v484 = vadd.f32 %v193, %v483
    %485 = vdwg.mxu0
    %v486 = vtanh.pop %v484
    %488 = vrot.lane.b32.xlu0 %v486, 32
    %v489 = vpop.permute.xlu0 %488
    %491 = vst.msk [vmem:[#allocation5] sm:$0x3] %vm144, %v489
    %v492 = vrot.slane %v486, 1
    %494 = vst.msk [vmem:[#allocation3 + $0x4] sm:$0x1] %vm52, %v486
    %495 = vst.msk [vmem:[#allocation3 + $0xc] sm:$0x1] %vm52, %v492
    %v496 = vld [vmem:[%s97] sm:$0x3]
    %497 = vst.msk [vmem:[#allocation4] sm:$0x3] %vm154, %v496
    %v498 = vld [vmem:[#allocation4] sm:$0x3]
    %v500 = vsel %vm160, %v498, 0
    %502 = vmatpush.msra.mxu0 0.0
    %503 = vmatpush.msra.mxu0 0.0
    %504 = vmatpush.msra.mxu0 0.0
    %505 = vmatpush.msra.mxu0 0.0
    %506 = vmatpush.msra.mxu0 0.0
    %507 = vmatpush.msra.mxu0 0.0
    %508 = vmatpush.msra.mxu0 0.0
    %509 = vmatpush.msra.mxu0 0.0
    %510 = vmatpush.msra.mxu0 %v128
    %511 = vmatpush.msra.mxu0 %v127
    %512 = vmatpush.msra.mxu0 %v126
    %513 = vmatpush.msra.mxu0 %v125
    %514 = vmatpush.msra.mxu0 %v124
    %515 = vmatpush.msra.mxu0 %v123
    %516 = vmatpush.msra.mxu0 %v122
    %517 = vmatpush.msra.mxu0 %v121
    %518 = vmatmul.f32.gmra.mxu0 %v500
    %v519 = vpop.f32.mrf.mxu0
    %v520 = vadd.f32 %v158, %v519
    %521 = vdwg.mxu0
    %v522 = vtanh.pop %v520
    %524 = vrot.lane.b32.xlu0 %v522, 32
    %v525 = vpop.permute.xlu0 %524
    %527 = vst.msk [vmem:[#allocation4] sm:$0x3] %vm144, %v525
    %528 = vst.msk [vmem:[#allocation5] sm:$0x3] %vm154, %v522
    %v529 = vld [vmem:[#allocation5] sm:$0x3]
    %v531 = vsel %vm160, %v529, 0
    %533 = vmatpush.msra.mxu0 0.0
    %534 = vmatpush.msra.mxu0 0.0
    %535 = vmatpush.msra.mxu0 0.0
    %536 = vmatpush.msra.mxu0 0.0
    %537 = vmatpush.msra.mxu0 0.0
    %538 = vmatpush.msra.mxu0 0.0
    %539 = vmatpush.msra.mxu0 0.0
    %540 = vmatpush.msra.mxu0 0.0
    %541 = vmatpush.msra.mxu0 %v136
    %542 = vmatpush.msra.mxu0 %v135
    %543 = vmatpush.msra.mxu0 %v134
    %544 = vmatpush.msra.mxu0 %v133
    %545 = vmatpush.msra.mxu0 %v132
    %546 = vmatpush.msra.mxu0 %v131
    %547 = vmatpush.msra.mxu0 %v130
    %548 = vmatpush.msra.mxu0 %v129
    %549 = vmatmul.f32.gmra.mxu0 %v531
    %v550 = vpop.f32.mrf.mxu0
    %v551 = vadd.f32 %v193, %v550
    %552 = vdwg.mxu0
    %v553 = vtanh.pop %v551
    %555 = vrot.lane.b32.xlu0 %v553, 32
    %v556 = vpop.permute.xlu0 %555
    %558 = vst.msk [vmem:[#allocation5] sm:$0x3] %vm144, %v556
    %v559 = vrot.slane %v553, 1
    %561 = vst.msk [vmem:[#allocation3 + $0x5] sm:$0x1] %vm52, %v553
    %562 = vst.msk [vmem:[#allocation3 + $0xd] sm:$0x1] %vm52, %v559
    %v563 = vld [vmem:[%s106] sm:$0x3]
    %564 = vst.msk [vmem:[#allocation4] sm:$0x3] %vm154, %v563
    %v565 = vld [vmem:[#allocation4] sm:$0x3]
    %v567 = vsel %vm160, %v565, 0
    %569 = vmatpush.msra.mxu0 0.0
    %570 = vmatpush.msra.mxu0 0.0
    %571 = vmatpush.msra.mxu0 0.0
    %572 = vmatpush.msra.mxu0 0.0
    %573 = vmatpush.msra.mxu0 0.0
    %574 = vmatpush.msra.mxu0 0.0
    %575 = vmatpush.msra.mxu0 0.0
    %576 = vmatpush.msra.mxu0 0.0
    %577 = vmatpush.msra.mxu0 %v128
    %578 = vmatpush.msra.mxu0 %v127
    %579 = vmatpush.msra.mxu0 %v126
    %580 = vmatpush.msra.mxu0 %v125
    %581 = vmatpush.msra.mxu0 %v124
    %582 = vmatpush.msra.mxu0 %v123
    %583 = vmatpush.msra.mxu0 %v122
    %584 = vmatpush.msra.mxu0 %v121
    %585 = vmatmul.f32.gmra.mxu0 %v567
    %v586 = vpop.f32.mrf.mxu0
    %v587 = vadd.f32 %v158, %v586
    %588 = vdwg.mxu0
    %v589 = vtanh.pop %v587
    %591 = vrot.lane.b32.xlu0 %v589, 32
    %v592 = vpop.permute.xlu0 %591
    %594 = vst.msk [vmem:[#allocation4] sm:$0x3] %vm144, %v592
    %595 = vst.msk [vmem:[#allocation5] sm:$0x3] %vm154, %v589
    %v596 = vld [vmem:[#allocation5] sm:$0x3]
    %v598 = vsel %vm160, %v596, 0
    %600 = vmatpush.msra.mxu0 0.0
    %601 = vmatpush.msra.mxu0 0.0
    %602 = vmatpush.msra.mxu0 0.0
    %603 = vmatpush.msra.mxu0 0.0
    %604 = vmatpush.msra.mxu0 0.0
    %605 = vmatpush.msra.mxu0 0.0
    %606 = vmatpush.msra.mxu0 0.0
    %607 = vmatpush.msra.mxu0 0.0
    %608 = vmatpush.msra.mxu0 %v136
    %609 = vmatpush.msra.mxu0 %v135
    %610 = vmatpush.msra.mxu0 %v134
    %611 = vmatpush.msra.mxu0 %v133
    %612 = vmatpush.msra.mxu0 %v132
    %613 = vmatpush.msra.mxu0 %v131
    %614 = vmatpush.msra.mxu0 %v130
    %615 = vmatpush.msra.mxu0 %v129
    %616 = vmatmul.f32.gmra.mxu0 %v598
    %v617 = vpop.f32.mrf.mxu0
    %v618 = vadd.f32 %v193, %v617
    %619 = vdwg.mxu0
    %v620 = vtanh.pop %v618
    %622 = vrot.lane.b32.xlu0 %v620, 32
    %v623 = vpop.permute.xlu0 %622
    %625 = vst.msk [vmem:[#allocation5] sm:$0x3] %vm144, %v623
    %v626 = vrot.slane %v620, 1
    %628 = vst.msk [vmem:[#allocation3 + $0x6] sm:$0x1] %vm52, %v620
    %629 = vst.msk [vmem:[#allocation3 + $0xe] sm:$0x1] %vm52, %v626
    %v630 = vld [vmem:[%s115] sm:$0x3]
    %631 = vst.msk [vmem:[#allocation4] sm:$0x3] %vm154, %v630
    %v632 = vld [vmem:[#allocation4] sm:$0x3]
    %v634 = vsel %vm160, %v632, 0
    %636 = vmatpush.msra.mxu0 0.0
    %637 = vmatpush.msra.mxu0 0.0
    %638 = vmatpush.msra.mxu0 0.0
    %639 = vmatpush.msra.mxu0 0.0
    %640 = vmatpush.msra.mxu0 0.0
    %641 = vmatpush.msra.mxu0 0.0
    %642 = vmatpush.msra.mxu0 0.0
    %643 = vmatpush.msra.mxu0 0.0
    %644 = vmatpush.msra.mxu0 %v128
    %645 = vmatpush.msra.mxu0 %v127
    %646 = vmatpush.msra.mxu0 %v126
    %647 = vmatpush.msra.mxu0 %v125
    %648 = vmatpush.msra.mxu0 %v124
    %649 = vmatpush.msra.mxu0 %v123
    %650 = vmatpush.msra.mxu0 %v122
    %651 = vmatpush.msra.mxu0 %v121
    %652 = vmatmul.f32.gmra.mxu0 %v634
    %v653 = vpop.f32.mrf.mxu0
    %v654 = vadd.f32 %v158, %v653
    %655 = vdwg.mxu0
    %v656 = vtanh.pop %v654
    %658 = vrot.lane.b32.xlu0 %v656, 32
    %v659 = vpop.permute.xlu0 %658
    %661 = vst.msk [vmem:[#allocation4] sm:$0x3] %vm144, %v659
    %662 = vst.msk [vmem:[#allocation5] sm:$0x3] %vm154, %v656
    %v663 = vld [vmem:[#allocation5] sm:$0x3]
    %v665 = vsel %vm160, %v663, 0
    %667 = vmatpush.msra.mxu0 0.0
    %668 = vmatpush.msra.mxu0 0.0
    %669 = vmatpush.msra.mxu0 0.0
    %670 = vmatpush.msra.mxu0 0.0
    %671 = vmatpush.msra.mxu0 0.0
    %672 = vmatpush.msra.mxu0 0.0
    %673 = vmatpush.msra.mxu0 0.0
    %674 = vmatpush.msra.mxu0 0.0
    %675 = vmatpush.msra.mxu0 %v136
    %676 = vmatpush.msra.mxu0 %v135
    %677 = vmatpush.msra.mxu0 %v134
    %678 = vmatpush.msra.mxu0 %v133
    %679 = vmatpush.msra.mxu0 %v132
    %680 = vmatpush.msra.mxu0 %v131
    %681 = vmatpush.msra.mxu0 %v130
    %682 = vmatpush.msra.mxu0 %v129
    %683 = vmatmul.f32.gmra.mxu0 %v665
    %v684 = vpop.f32.mrf.mxu0
    %v685 = vadd.f32 %v193, %v684
    %686 = vdwg.mxu0
    %v687 = vtanh.pop %v685
    %689 = vrot.lane.b32.xlu0 %v687, 32
    %v690 = vpop.permute.xlu0 %689
    %692 = vst.msk [vmem:[#allocation5] sm:$0x3] %vm144, %v690
    %v693 = vrot.slane %v687, 1
    %695 = vst.msk [vmem:[#allocation3 + $0x7] sm:$0x1] %vm52, %v687
    %696 = vst.msk [vmem:[#allocation3 + $0xf] sm:$0x1] %vm52, %v693
    %v697 = vld [vmem:[#allocation3] sm:$0xff]
    %v698 = vld [vmem:[#allocation3 + $0x8] sm:$0xff]
    %v699 = vld [vmem:[%s7] sm:$0xff]
    %v700 = vld [vmem:[%s7 + $0x8] sm:$0xff]
    %v701 = vld [vmem:[%s7 + $0x10] sm:$0xff]
    %v702 = vld [vmem:[%s7 + $0x18] sm:$0xff]
    %v703 = vld [vmem:[%s8] sm:$0x1]
    %v705 = vperm.slane %v703, 0
    %vm707 = vcmask 261120
    %v709 = vsel %vm707, %v697, 0
    %v712 = vsel %vm707, %v698, 0
    %714 = vmatpush.msra.mxu0 0.0
    %715 = vmatpush.msra.mxu0 0.0
    %716 = vmatpush.msra.mxu0 0.0
    %717 = vmatpush.msra.mxu0 0.0
    %718 = vmatpush.msra.mxu0 0.0
    %719 = vmatpush.msra.mxu0 0.0
    %720 = vmatpush.msra.mxu0 0.0
    %721 = vmatpush.msra.mxu0 0.0
    %722 = vmatpush.msra.mxu0 0.0
    %723 = vmatpush.msra.mxu0 0.0
    %724 = vmatpush.msra.mxu0 0.0
    %725 = vmatpush.msra.mxu0 0.0
    %726 = vmatpush.msra.mxu0 %v702
    %727 = vmatpush.msra.mxu0 %v701
    %728 = vmatpush.msra.mxu0 %v700
    %729 = vmatpush.msra.mxu0 %v699
    %730 = vmatmul.f32.gmra.mxu0 %v709
    %v731 = vpop.f32.mrf.mxu0
    %v732 = vadd.f32 %v705, %v731
    %733 = vmatmul.f32.gmra.mxu0 %v712
    %v734 = vpop.f32.mrf.mxu0
    %v735 = vadd.f32 %v705, %v734
    %736 = vdwg.mxu0
    %737 = vst [vmem:[#allocation9] sm:$0xff] %v732
    %738 = vst [vmem:[#allocation9 + $0x8] sm:$0xff] %v735
    %739 = vst.msk [vmem:[#allocation10] sm:$0x3] %vm154, %v656
    %s740 = scalar_lea.vmem [#allocation10], 2
    %741 = vst.msk [vmem:[%s740] sm:$0x3] %vm154, %v687
    // Predicated region
    $region42: #{rnn_lm_forward.1} parent=1 // pred_check
      _
    $region43: #{rnn_lm_forward.1} parent=1 // pred_check_branch
      %743 = sbr.rel (0) target = $region45
    $region44: #{rnn_lm_forward.1} parent=1 // pred_region
      %745 = vsyncadd [#allocation7], 0
      %s746 = sshll.u32 [#allocation9], 4
      %s747 = int_to_ptr.vmem [resolvable:$true] %s746
      %s748 = sshll.u32 %s9, 4
      %s749 = int_to_ptr.hbm [resolvable:$true] %s748
      %754 = dma.vmem_to_hbm [thread:$0]  %s747, 256, %s749, [#allocation7], 128, 128, 8
    $region45: #{rnn_lm_forward.1} parent=1 // pred_fallthru
      _
    // Predicated region
    $region46: #{rnn_lm_forward.1} parent=1 // pred_check
      _
    $region47: #{rnn_lm_forward.1} parent=1 // pred_check_branch
      %756 = sbr.rel (0) target = $region49
    $region48: #{rnn_lm_forward.1} parent=1 // pred_region
      %758 = vsyncadd [#allocation11], 0
      %s759 = sshll.u32 [#allocation10], 4
      %s760 = int_to_ptr.vmem [resolvable:$true] %s759
      %s761 = sshll.u32 %s10, 4
      %s762 = int_to_ptr.hbm [resolvable:$true] %s761
      %767 = dma.vmem_to_hbm [thread:$0]  %s760, 64, %s762, [#allocation11], 32, 32, 2
    $region49: #{rnn_lm_forward.1} parent=1 // pred_fallthru
      _
    // Predicated region
    $region50: #{rnn_lm_forward.1} parent=1 // pred_check
      _
    $region51: #{rnn_lm_forward.1} parent=1 // pred_check_branch
      %769 = sbr.rel (0) target = $region53
    $region52: #{rnn_lm_forward.1} parent=1 // pred_region
      %771 = dma.done [#allocation7], 256
    $region53: #{rnn_lm_forward.1} parent=1 // pred_fallthru
      _
    // Predicated region
    $region54: #{rnn_lm_forward.1} parent=1 // pred_check
      _
    $region55: #{rnn_lm_forward.1} parent=1 // pred_check_branch
      %773 = sbr.rel (0) target = $region57
    $region56: #{rnn_lm_forward.1} parent=1 // pred_region
      %775 = dma.done [#allocation11], 64
    $region57: #{rnn_lm_forward.1} parent=1 // pred_fallthru
      _
    %776 = vsyncpa [#allocation7], 1
    %777 = vsyncpa [#allocation11], 1
    %778 = vsyncpa [#allocation8], 1

</llo_original>
